<compile_context>
chip_gen: v6e
topology: v6e:2x2x1
jax: 0.10.0
libtpu: 0.0.40
codegen_flags: <defaults>
</compile_context>

<pallas_src>
import numpy as np
import jax
import jax.numpy as jnp
from jax.experimental import pallas as pl
from jax.experimental.pallas import tpu as pltpu


def _make_kernel(delta_var, delta_dist, delta_reg, var_w, dist_w, reg_w,
                 tile_n, use_cache):
    def kernel(lab_ref, data_ref, o_ref, size_ref, cent_ref, var_ref, *cache):
        p = pl.program_id(1)            # phase: 0 = sizes/centers, 1 = variance
        t = pl.program_id(2)            # pixel-tile index
        nt = pl.num_programs(2)
        D = data_ref.shape[1]
        C = size_ref.shape[1]           # padded cluster count (multiple of 8)
        cache_ref = cache[0] if use_cache else None

        # Contract the (big) pixel axis of both operands -> MXU.
        ct_dims = (((1,), (1,)), ((), ()))
        cid = jax.lax.broadcasted_iota(jnp.int32, (C, tile_n), 0)

        # Reset per-batch accumulators at the first step of phase 0.
        @pl.when(jnp.logical_and(p == 0, t == 0))
        def _init():
            size_ref[...] = jnp.zeros_like(size_ref)
            cent_ref[...] = jnp.zeros_like(cent_ref)
            var_ref[...] = jnp.zeros_like(var_ref)

        @pl.when(p == 0)
        def _phase0():
            lab = lab_ref[0]                                   # (1, TN) int32
            data = data_ref[0]                                 # (D, TN) f32
            if use_cache:
                start = pl.multiple_of(t * tile_n, tile_n)
                cache_ref[0:D, pl.ds(start, tile_n)] = data
                cache_ref[D:D + 1, pl.ds(start, tile_n)] = lab.astype(jnp.float32)
            onehot = (lab == cid).astype(jnp.float32)          # (C, TN), built in VMEM
            ones = jnp.ones((1, tile_n), jnp.float32)
            # Cluster sizes + raw center sums: big-K contractions on the MXU.
            size_ref[...] += jax.lax.dot_general(
                ones, onehot, ct_dims, preferred_element_type=jnp.float32)   # (1, C)
            cent_ref[...] += jax.lax.dot_general(
                data, onehot, ct_dims, preferred_element_type=jnp.float32)   # (D, C)

        @pl.when(p == 1)
        def _phase1():
            # First tile of phase 1: turn raw sums into true centers in-place
            # (dummy clusters get center 0 because their size/inverse is 0).
            @pl.when(t == 0)
            def _finalize_centers():
                sizes = size_ref[...]                                     # (1, C)
                real = (sizes != 0.0).astype(jnp.float32)
                inv = real / (sizes + (1.0 - real))
                cent_ref[...] = cent_ref[...] * inv

            if use_cache:
                start = pl.multiple_of(t * tile_n, tile_n)
                data = cache_ref[0:D, pl.ds(start, tile_n)]               # (D, TN)
                lab = cache_ref[D:D + 1, pl.ds(start, tile_n)].astype(jnp.int32)
            else:
                lab = lab_ref[0]
                data = data_ref[0]
            onehot = (lab == cid).astype(jnp.float32)                     # (C, TN)
            # Each pixel's own center, gathered on the otherwise-idle MXU.
            mu = jax.lax.dot_general(
                cent_ref[...], onehot, (((1,), (0,)), ((), ())),
                preferred_element_type=jnp.float32)                       # (D, TN)
            diff = data - mu                                              # direct diff (precision)
            dist = jnp.sqrt(jnp.sum(diff * diff, axis=0, keepdims=True))  # (1, TN)
            err = jnp.maximum(dist - delta_var, 0.0) ** 2                 # (1, TN)
            var_ref[...] += jax.lax.dot_general(
                err, onehot, ct_dims, preferred_element_type=jnp.float32)  # (1, C)

            # Epilogue: O(C)/O(C^2) math once per batch, at the last tile.
            @pl.when(t == nt - 1)
            def _epilogue():
                sizes = size_ref[...]                                     # (1, C)
                real = (sizes != 0.0).astype(jnp.float32)
                inv = real / (sizes + (1.0 - real))
                ncl = jnp.sum(real, keepdims=True)                        # (1, 1)
                pairs = ncl * (ncl - 1.0) * 0.5

                var_b = jnp.sum(var_ref[...] * inv, keepdims=True) / ncl

                cent = cent_ref[...]                                      # (D, C) true centers
                col = jax.lax.broadcasted_iota(jnp.int32, (1, C), 1)
                dist_sum = jnp.zeros((1, 1), jnp.float32)
                for j in range(C):                                        # unrolled VPU loop
                    dcol = cent - cent[:, j:j + 1]                        # (D, C)
                    dnorm = jnp.sqrt(jnp.sum(dcol * dcol, axis=0, keepdims=True))
                    mask = ((col != j).astype(jnp.float32)
                            * real * real[:, j:j + 1])                    # off-diag, real pairs
                    cost = jnp.maximum(delta_dist - dnorm, 0.0) ** 2 * mask
                    dist_sum = dist_sum + jnp.sum(cost, keepdims=True)
                # NOTE: guards the degenerate single-cluster batch; the PyTorch
                # reference divides by zero there (inf/NaN).
                dist_b = jnp.where(pairs > 0.0,
                                   dist_sum * 0.5 / jnp.maximum(pairs, 1.0),
                                   jnp.zeros_like(dist_sum))

                cnorm = jnp.sqrt(jnp.sum(cent * cent, axis=0, keepdims=True))
                reg_b = jnp.sum(jnp.maximum(cnorm - delta_reg, 0.0) ** 2,
                                keepdims=True) / ncl

                o_ref[0] = var_w * var_b + dist_w * dist_b + reg_w * reg_b
    return kernel


def discriminative_loss(data, labels, var_weight=1.0, dist_weight=1.0,
                        reg_weight=1.0, delta_var=None, delta_dist=None,
                        delta_reg=None, tile_n=None, max_clusters=None,
                        cache_in_vmem=None):
    data = jnp.asarray(data, jnp.float32)
    B, D = int(data.shape[0]), int(data.shape[1])
    data = data.reshape(B, D, -1)                  # stays on device
    N = int(data.shape[2])

    # Explicit `is None` (the original module's truthiness would drop 0.0).
    delta_var = 1.0 if delta_var is None else float(delta_var)
    delta_dist = 2.0 if delta_dist is None else float(delta_dist)
    delta_reg = float(np.sqrt(D)) if delta_reg is None else float(delta_reg)

    labels = jnp.asarray(labels).reshape(B, -1).astype(jnp.int32)
    if max_clusters is None:
        # TODO(synk): exact data-dependent cluster count (torch.unique equiv)
        # needs a host sync; pass max_clusters= to keep the whole loss
        # on-device and async-dispatchable.
        max_c = max(int(np.unique(np.asarray(labels[b])).size) for b in range(B))
    else:
        max_c = int(max_clusters)   # must bound the per-image distinct labels
    max_c = max(1, max_c)
    c_pad = max(8, ((max_c + 7) // 8) * 8)         # sublane-aligned cluster dim

    # On-device compact relabel: distinct labels of image b -> 0..n_b-1.
    sentinel = jnp.iinfo(jnp.int32).max

    def _remap(lab_b):
        uniq = jnp.unique(lab_b, size=max_c, fill_value=sentinel)
        return jnp.searchsorted(uniq, lab_b).astype(jnp.int32)

    lab_map = jnp.stack([_remap(labels[b]) for b in range(B)])

    # Large, lane-aligned pixel tiles: amortize the fixed per-grid-step cost.
    if tile_n is None:
        tile_n = min(32768, ((N + 127) // 128) * 128)
        while tile_n > 1024 and (c_pad + 4 * (D + 2)) * tile_n * 4 > 24 * 1024 * 1024:
            tile_n //= 2
        tile_n = max(128, (tile_n // 128) * 128)
    assert tile_n % 128 == 0
    n_pad = ((N + tile_n - 1) // tile_n) * tile_n
    if n_pad != N:
        data = jnp.pad(data, ((0, 0), (0, 0), (0, n_pad - N)))
        lab_map = jnp.pad(lab_map, ((0, 0), (0, n_pad - N)),
                          constant_values=c_pad)   # sentinel: matches no cluster
    lab_dev = lab_map.reshape(B, 1, n_pad)
    nt = n_pad // tile_n

    # VMEM budget: cache the whole (data + label row) batch when it fits so
    # phase 1 never re-reads HBM.  v7x has only 64 MiB VMEM -> smaller gate.
    vmem_cap = 64 * 1024 * 1024
    try:
        vmem_cap = int(pltpu.get_tpu_info().vmem_capacity_bytes)
    except Exception:
        pass
    vmem_limit = int(min(0.85 * vmem_cap, 112 * 1024 * 1024))
    per_tile_bytes = (c_pad + 4 * (D + 2)) * tile_n * 4     # onehot + buffers + temps (rough)
    cache_rows = ((D + 1 + 7) // 8) * 8                     # physical sublane padding
    cache_bytes = cache_rows * n_pad * 4
    if cache_in_vmem is None:
        use_cache = cache_bytes + 2 * per_tile_bytes < int(0.6 * vmem_limit)
    else:
        use_cache = bool(cache_in_vmem)

    if use_cache:
        # Phase 1 pins tile 0 -> no new DMAs; tiles are read from the cache.
        tile_idx = lambda b, p, t: (b, 0, t * (1 - p))
    else:
        tile_idx = lambda b, p, t: (b, 0, t)

    scratch = [pltpu.VMEM((1, c_pad), jnp.float32),    # cluster sizes (row form)
               pltpu.VMEM((D, c_pad), jnp.float32),    # center sums -> true centers
               pltpu.VMEM((1, c_pad), jnp.float32)]    # hinged variance accumulator
    if use_cache:
        scratch.append(pltpu.VMEM((D + 1, n_pad), jnp.float32))  # data rows + label row

    kernel = _make_kernel(delta_var, delta_dist, delta_reg,
                          float(var_weight), float(dist_weight),
                          float(reg_weight), tile_n, use_cache)
    per_batch = pl.pallas_call(
        kernel,
        out_shape=jax.ShapeDtypeStruct((B, 1, 1), jnp.float32),
        grid_spec=pltpu.PrefetchScalarGridSpec(
            num_scalar_prefetch=0,
            grid=(B, 2, nt),                          # (batch, phase, pixel tile)
            in_specs=[
                pl.BlockSpec((1, 1, tile_n), tile_idx),   # labels
                pl.BlockSpec((1, D, tile_n), tile_idx),   # data
            ],
            out_specs=pl.BlockSpec((1, 1, 1), lambda b, p, t: (b, 0, 0)),
            scratch_shapes=scratch),
        compiler_params=pltpu.CompilerParams(
            dimension_semantics=("parallel", "arbitrary", "arbitrary"),
            vmem_limit_bytes=vmem_limit),
    )(lab_dev, data)
    return jnp.mean(per_batch)


def _reference_loss(data, labels, var_weight=1.0, dist_weight=1.0,
                    reg_weight=1.0, delta_var=1.0, delta_dist=2.0,
                    delta_reg=None):
    """Pure NumPy transliteration of the PyTorch forward (float64)."""
    data = np.asarray(data, np.float64)
    labels = np.asarray(labels)
    B, D = data.shape[0], data.shape[1]
    if delta_reg is None:
        delta_reg = np.sqrt(D)
    data = data.reshape(B, D, -1)
    labels = labels.reshape(B, -1)
    N = data.shape[2]
    ind_list = []
    for b in range(B):
        uniq = np.unique(labels[b])
        ind_list.append((labels[b][None, :] == uniq[:, None]).astype(np.float64))
    C = max(i.shape[0] for i in ind_list)
    cind = np.stack([np.concatenate([i, np.zeros((C - i.shape[0], N))], 0)
                     for i in ind_list])
    c_sizes = cind.sum(2)
    real = (c_sizes != 0).astype(np.float64)
    dummy = (c_sizes == 0).astype(np.float64)
    n_clusters = real.sum(1)
    cluster_pairs = n_clusters * (n_clusters - 1) / 2
    inv = real / (c_sizes + dummy)
    centers = (data[:, None, :, :] * cind[:, :, None, :]).sum(3) * inv[:, :, None]
    dfc = np.linalg.norm(np.transpose(data, (0, 2, 1))[:, None, :, :]
                         - centers[:, :, None, :], axis=3)
    err = np.clip(dfc - delta_var, 0, None) ** 2
    var_terms = (cind * err).sum(2) * inv
    var_term = (var_terms.sum(1) / n_clusters).mean()
    dm = np.linalg.norm(centers[:, None, :, :] - centers[:, :, None, :], axis=3)
    eye = np.eye(C)
    cost = np.clip(delta_dist - (dm + eye * delta_dist
                                 + dummy[:, None, :] * delta_dist
                                 + dummy[:, :, None] * delta_dist), 0, None) ** 2
    dist_term = (cost.sum(2).sum(1) / 2 / cluster_pairs).mean()
    reg_term = ((np.clip(np.linalg.norm(centers, axis=2) - delta_reg, 0, None) ** 2
                 ).sum(1) / n_clusters).mean()
    return (var_weight * var_term + dist_weight * dist_term
            + reg_weight * reg_term)


if __name__ == "__main__":
    key = jax.random.PRNGKey(0)
    B, D, H, W = 2, 4, 16, 16
    kd, kl = jax.random.split(key)
    data = jax.random.normal(kd, (B, D, H, W), dtype=jnp.float32)
    labels = jax.random.randint(kl, (B, H, W), 0, 4, dtype=jnp.int32)

    ref = _reference_loss(np.asarray(data), np.asarray(labels))

    # Path 1: fully on-device label remap (static max_clusters), multi-tile
    # grid, phase 1 served from the VMEM batch cache (auto-enabled here).
    loss1 = discriminative_loss(data, labels, tile_n=128, max_clusters=8)
    loss1 = jax.block_until_ready(loss1)
    assert np.isfinite(float(loss1))
    assert np.allclose(float(loss1), float(ref), rtol=5e-3, atol=5e-3), \
        (float(loss1), float(ref))

    # Path 2: host cluster-count fallback, default (single) tile, streaming
    # phase 1 (VMEM cache forced off) -- exercises the no-cache code path.
    loss2 = discriminative_loss(data, labels, cache_in_vmem=False)
    loss2 = jax.block_until_ready(loss2)
    assert np.isfinite(float(loss2))
    assert np.allclose(float(loss2), float(ref), rtol=5e-3, atol=5e-3), \
        (float(loss2), float(ref))

    print("KERNEL_OK")
</pallas_src>

<mosaic_0001>
module attributes {stable_mosaic.version = 11 : i64} {
  func.func @kernel(%arg0: i32, %arg1: i32, %arg2: i32, %arg3: memref<1x1x128xi32, #tpu.memory_space<vmem>>, %arg4: memref<1x4x128xf32, #tpu.memory_space<vmem>>, %arg5: memref<1x1x1xf32, #tpu.memory_space<vmem>>, %arg6: memref<1x8xf32, #tpu.memory_space<vmem>>, %arg7: memref<4x8xf32, #tpu.memory_space<vmem>>, %arg8: memref<1x8xf32, #tpu.memory_space<vmem>>, %arg9: memref<5x256xf32, #tpu.memory_space<vmem>>) attributes {dimension_semantics = [#tpu.dimension_semantics<parallel>, #tpu.dimension_semantics<arbitrary>, #tpu.dimension_semantics<arbitrary>], iteration_bounds = array<i64: 2, 2, 2>, scalar_prefetch = 0 : i64, scratch_operands = 4 : i64, tpu.core_type = #tpu.core_type<tc>, window_params = [{transform_indices = @transform_0, window_bounds = array<i64: 1, 1, 128>}, {transform_indices = @transform_1, window_bounds = array<i64: 1, 4, 128>}, {transform_indices = @transform_2, window_bounds = array<i64: 1, 1, 1>}]} {
    %0 = tpu.iota {dimensions = array<i32: 0>} : vector<8x128xi32>
    %c0_i32 = arith.constant 0 : i32
    %1 = arith.cmpi eq, %arg1, %c0_i32 : i32
    %c0_i32_0 = arith.constant 0 : i32
    %2 = arith.cmpi eq, %arg2, %c0_i32_0 : i32
    %3 = arith.andi %1, %2 : i1
    %4 = arith.extui %3 : i1 to i32
    %c0_i32_1 = arith.constant 0 : i32
    %5 = arith.cmpi ne, %4, %c0_i32_1 : i32
    scf.if %5 {
      %cst = arith.constant 0.000000e+00 : f32
      %12 = vector.broadcast %cst : f32 to vector<1x8xf32>
      %c0 = arith.constant 0 : index
      %c0_5 = arith.constant 0 : index
      %13 = vector.load %arg6[%c0, %c0_5] : memref<1x8xf32, #tpu.memory_space<vmem>>, vector<1x8xf32>
      tpu.vector_store %arg6[%c0, %c0_5], %12 {strides = array<i32>} : memref<1x8xf32, #tpu.memory_space<vmem>>, vector<1x8xf32>,
      %cst_6 = arith.constant 0.000000e+00 : f32
      %14 = vector.broadcast %cst_6 : f32 to vector<4x8xf32>
      %c0_7 = arith.constant 0 : index
      %c0_8 = arith.constant 0 : index
      %15 = vector.load %arg7[%c0_7, %c0_8] : memref<4x8xf32, #tpu.memory_space<vmem>>, vector<4x8xf32>
      tpu.vector_store %arg7[%c0_7, %c0_8], %14 {strides = array<i32>} : memref<4x8xf32, #tpu.memory_space<vmem>>, vector<4x8xf32>,
      %cst_9 = arith.constant 0.000000e+00 : f32
      %16 = vector.broadcast %cst_9 : f32 to vector<1x8xf32>
      %c0_10 = arith.constant 0 : index
      %c0_11 = arith.constant 0 : index
      %17 = vector.load %arg8[%c0_10, %c0_11] : memref<1x8xf32, #tpu.memory_space<vmem>>, vector<1x8xf32>
      tpu.vector_store %arg8[%c0_10, %c0_11], %16 {strides = array<i32>} : memref<1x8xf32, #tpu.memory_space<vmem>>, vector<1x8xf32>,
    } else {
    }
    %c0_i32_2 = arith.constant 0 : i32
    %6 = arith.cmpi eq, %arg1, %c0_i32_2 : i32
    %7 = arith.extui %6 : i1 to i32
    %c0_i32_3 = arith.constant 0 : i32
    %8 = arith.cmpi ne, %7, %c0_i32_3 : i32
    scf.if %8 {
      %c0 = arith.constant 0 : index
      %c0_5 = arith.constant 0 : index
      %c0_6 = arith.constant 0 : index
      %12 = vector.load %arg3[%c0, %c0_5, %c0_6] : memref<1x1x128xi32, #tpu.memory_space<vmem>>, vector<1x1x128xi32>
      %13 = vector.shape_cast %12 : vector<1x1x128xi32> to vector<1x128xi32>
      %c0_7 = arith.constant 0 : index
      %c0_8 = arith.constant 0 : index
      %c0_9 = arith.constant 0 : index
      %14 = vector.load %arg4[%c0_7, %c0_8, %c0_9] : memref<1x4x128xf32, #tpu.memory_space<vmem>>, vector<1x4x128xf32>
      %15 = vector.shape_cast %14 : vector<1x4x128xf32> to vector<4x128xf32>
      %c128_i32 = arith.constant 128 : i32
      %16 = arith.muli %arg2, %c128_i32 : i32
      %17 = tpu.assume_multiple %16, 128 : i32
      %c0_10 = arith.constant 0 : index
      %18 = arith.index_cast %17 : i32 to index
      %19 = vector.load %arg9[%c0_10, %18] : memref<5x256xf32, #tpu.memory_space<vmem>>, vector<4x128xf32>
      tpu.vector_store %arg9[%c0_10, %18], %15 {strides = array<i32>} : memref<5x256xf32, #tpu.memory_space<vmem>>, vector<4x128xf32>,
      %20 = arith.sitofp %13 : vector<1x128xi32> to vector<1x128xf32>
      %c4 = arith.constant 4 : index
      %21 = arith.index_cast %17 : i32 to index
      %22 = vector.load %arg9[%c4, %21] : memref<5x256xf32, #tpu.memory_space<vmem>>, vector<1x128xf32>
      tpu.vector_store %arg9[%c4, %21], %20 {strides = array<i32>} : memref<5x256xf32, #tpu.memory_space<vmem>>, vector<1x128xf32>,
      %23 = vector.broadcast %13 : vector<1x128xi32> to vector<8x128xi32>
      %24 = arith.cmpi eq, %23, %0 : vector<8x128xi32>
      %25 = arith.extui %24 : vector<8x128xi1> to vector<8x128xi32>
      %26 = arith.sitofp %25 : vector<8x128xi32> to vector<8x128xf32>
      %cst = arith.constant 1.000000e+00 : f32
      %27 = vector.broadcast %cst : f32 to vector<1x128xf32>
      %c0_11 = arith.constant 0 : index
      %c0_12 = arith.constant 0 : index
      %28 = vector.load %arg6[%c0_11, %c0_12] : memref<1x8xf32, #tpu.memory_space<vmem>>, vector<1x8xf32>
      %cst_13 = arith.constant dense<0.000000e+00> : vector<1x8xf32>
      %29 = tpu.matmul %27, %26, %cst_13 {dimension_numbers = #tpu.dot_dimension_numbers<[1], [1], [0], [0], [0, 0, 1, 0], [], []>} : vector<1x128xf32>, vector<8x128xf32>, vector<1x8xf32> -> vector<1x8xf32>
      %30 = arith.addf %28, %29 : vector<1x8xf32>
      %c0_14 = arith.constant 0 : index
      %c0_15 = arith.constant 0 : index
      %31 = vector.load %arg6[%c0_14, %c0_15] : memref<1x8xf32, #tpu.memory_space<vmem>>, vector<1x8xf32>
      tpu.vector_store %arg6[%c0_14, %c0_15], %30 {strides = array<i32>} : memref<1x8xf32, #tpu.memory_space<vmem>>, vector<1x8xf32>,
      %c0_16 = arith.constant 0 : index
      %c0_17 = arith.constant 0 : index
      %32 = vector.load %arg7[%c0_16, %c0_17] : memref<4x8xf32, #tpu.memory_space<vmem>>, vector<4x8xf32>
      %cst_18 = arith.constant dense<0.000000e+00> : vector<4x8xf32>
      %33 = tpu.matmul %15, %26, %cst_18 {dimension_numbers = #tpu.dot_dimension_numbers<[1], [1], [0], [0], [0, 0, 1, 0], [], []>} : vector<4x128xf32>, vector<8x128xf32>, vector<4x8xf32> -> vector<4x8xf32>
      %34 = arith.addf %32, %33 : vector<4x8xf32>
      %c0_19 = arith.constant 0 : index
      %c0_20 = arith.constant 0 : index
      %35 = vector.load %arg7[%c0_19, %c0_20] : memref<4x8xf32, #tpu.memory_space<vmem>>, vector<4x8xf32>
      tpu.vector_store %arg7[%c0_19, %c0_20], %34 {strides = array<i32>} : memref<4x8xf32, #tpu.memory_space<vmem>>, vector<4x8xf32>,
    } else {
    }
    %c1_i32 = arith.constant 1 : i32
    %9 = arith.cmpi eq, %arg1, %c1_i32 : i32
    %10 = arith.extui %9 : i1 to i32
    %c0_i32_4 = arith.constant 0 : i32
    %11 = arith.cmpi ne, %10, %c0_i32_4 : i32
    scf.if %11 {
      %c0_i32_5 = arith.constant 0 : i32
      %12 = arith.cmpi eq, %arg2, %c0_i32_5 : i32
      %13 = arith.extui %12 : i1 to i32
      %c0_i32_6 = arith.constant 0 : i32
      %14 = arith.cmpi ne, %13, %c0_i32_6 : i32
      scf.if %14 {
        %c0_19 = arith.constant 0 : index
        %c0_20 = arith.constant 0 : index
        %45 = vector.load %arg6[%c0_19, %c0_20] : memref<1x8xf32, #tpu.memory_space<vmem>>, vector<1x8xf32>
        %cst_21 = arith.constant 0.000000e+00 : f32
        %46 = vector.broadcast %cst_21 : f32 to vector<1x8xf32>
        %47 = arith.cmpf one, %45, %46 : vector<1x8xf32>
        %48 = arith.extui %47 : vector<1x8xi1> to vector<1x8xi32>
        %49 = arith.sitofp %48 : vector<1x8xi32> to vector<1x8xf32>
        %cst_22 = arith.constant 1.000000e+00 : f32
        %50 = vector.broadcast %cst_22 : f32 to vector<1x8xf32>
        %51 = arith.subf %50, %49 : vector<1x8xf32>
        %52 = arith.addf %45, %51 : vector<1x8xf32>
        %53 = arith.divf %49, %52 : vector<1x8xf32>
        %c0_23 = arith.constant 0 : index
        %c0_24 = arith.constant 0 : index
        %54 = vector.load %arg7[%c0_23, %c0_24] : memref<4x8xf32, #tpu.memory_space<vmem>>, vector<4x8xf32>
        %55 = vector.broadcast %53 : vector<1x8xf32> to vector<4x8xf32>
        %56 = arith.mulf %54, %55 : vector<4x8xf32>
        %c0_25 = arith.constant 0 : index
        %c0_26 = arith.constant 0 : index
        %57 = vector.load %arg7[%c0_25, %c0_26] : memref<4x8xf32, #tpu.memory_space<vmem>>, vector<4x8xf32>
        tpu.vector_store %arg7[%c0_25, %c0_26], %56 {strides = array<i32>} : memref<4x8xf32, #tpu.memory_space<vmem>>, vector<4x8xf32>,
      } else {
      }
      %c128_i32 = arith.constant 128 : i32
      %15 = arith.muli %arg2, %c128_i32 : i32
      %16 = tpu.assume_multiple %15, 128 : i32
      %c0 = arith.constant 0 : index
      %17 = arith.index_cast %16 : i32 to index
      %18 = vector.load %arg9[%c0, %17] : memref<5x256xf32, #tpu.memory_space<vmem>>, vector<4x128xf32>
      %c4 = arith.constant 4 : index
      %19 = arith.index_cast %16 : i32 to index
      %20 = vector.load %arg9[%c4, %19] : memref<5x256xf32, #tpu.memory_space<vmem>>, vector<1x128xf32>
      %21 = arith.fptosi %20 : vector<1x128xf32> to vector<1x128xi32>
      %22 = vector.broadcast %21 : vector<1x128xi32> to vector<8x128xi32>
      %23 = arith.cmpi eq, %22, %0 : vector<8x128xi32>
      %24 = arith.extui %23 : vector<8x128xi1> to vector<8x128xi32>
      %25 = arith.sitofp %24 : vector<8x128xi32> to vector<8x128xf32>
      %c0_7 = arith.constant 0 : index
      %c0_8 = arith.constant 0 : index
      %26 = vector.load %arg7[%c0_7, %c0_8] : memref<4x8xf32, #tpu.memory_space<vmem>>, vector<4x8xf32>
      %cst = arith.constant dense<0.000000e+00> : vector<4x128xf32>
      %27 = tpu.matmul %26, %25, %cst {dimension_numbers = #tpu.dot_dimension_numbers<[1], [0], [0], [1], [0, 0, 1, 1], [], []>} : vector<4x8xf32>, vector<8x128xf32>, vector<4x128xf32> -> vector<4x128xf32>
      %28 = arith.subf %18, %27 : vector<4x128xf32>
      %29 = arith.mulf %28, %28 : vector<4x128xf32>
      %cst_9 = arith.constant dense<0.000000e+00> : vector<128xf32>
      %30 = vector.multi_reduction <add>, %29, %cst_9 [0] : vector<4x128xf32> to vector<128xf32>
      %31 = vector.shape_cast %30 : vector<128xf32> to vector<1x128xf32>
      %32 = math.sqrt %31 : vector<1x128xf32>
      %cst_10 = arith.constant 1.000000e+00 : f32
      %33 = vector.broadcast %cst_10 : f32 to vector<1x128xf32>
      %34 = arith.subf %32, %33 : vector<1x128xf32>
      %cst_11 = arith.constant 0.000000e+00 : f32
      %35 = vector.broadcast %cst_11 : f32 to vector<1x128xf32>
      %36 = arith.maximumf %34, %35 : vector<1x128xf32>
      %37 = arith.mulf %36, %36 : vector<1x128xf32>
      %c0_12 = arith.constant 0 : index
      %c0_13 = arith.constant 0 : index
      %38 = vector.load %arg8[%c0_12, %c0_13] : memref<1x8xf32, #tpu.memory_space<vmem>>, vector<1x8xf32>
      %cst_14 = arith.constant dense<0.000000e+00> : vector<1x8xf32>
      %39 = tpu.matmul %37, %25, %cst_14 {dimension_numbers = #tpu.dot_dimension_numbers<[1], [1], [0], [0], [0, 0, 1, 0], [], []>} : vector<1x128xf32>, vector<8x128xf32>, vector<1x8xf32> -> vector<1x8xf32>
      %40 = arith.addf %38, %39 : vector<1x8xf32>
      %c0_15 = arith.constant 0 : index
      %c0_16 = arith.constant 0 : index
      %41 = vector.load %arg8[%c0_15, %c0_16] : memref<1x8xf32, #tpu.memory_space<vmem>>, vector<1x8xf32>
      tpu.vector_store %arg8[%c0_15, %c0_16], %40 {strides = array<i32>} : memref<1x8xf32, #tpu.memory_space<vmem>>, vector<1x8xf32>,
      %c1_i32_17 = arith.constant 1 : i32
      %42 = arith.cmpi eq, %arg2, %c1_i32_17 : i32
      %43 = arith.extui %42 : i1 to i32
      %c0_i32_18 = arith.constant 0 : i32
      %44 = arith.cmpi ne, %43, %c0_i32_18 : i32
      scf.if %44 {
        %c0_19 = arith.constant 0 : index
        %c0_20 = arith.constant 0 : index
        %45 = vector.load %arg6[%c0_19, %c0_20] : memref<1x8xf32, #tpu.memory_space<vmem>>, vector<1x8xf32>
        %cst_21 = arith.constant 0.000000e+00 : f32
        %46 = vector.broadcast %cst_21 : f32 to vector<1x8xf32>
        %47 = arith.cmpf one, %45, %46 : vector<1x8xf32>
        %48 = arith.extui %47 : vector<1x8xi1> to vector<1x8xi32>
        %49 = arith.sitofp %48 : vector<1x8xi32> to vector<1x8xf32>
        %cst_22 = arith.constant 1.000000e+00 : f32
        %50 = vector.broadcast %cst_22 : f32 to vector<1x8xf32>
        %51 = arith.subf %50, %49 : vector<1x8xf32>
        %52 = arith.addf %45, %51 : vector<1x8xf32>
        %53 = arith.divf %49, %52 : vector<1x8xf32>
        %54 = vector.shape_cast %49 : vector<1x8xf32> to vector<1x1x8xf32>
        %cst_23 = arith.constant dense<0.000000e+00> : vector<1xf32>
        %55 = vector.multi_reduction <add>, %54, %cst_23 [1, 2] : vector<1x1x8xf32> to vector<1xf32>
        %56 = vector.shape_cast %55 : vector<1xf32> to vector<1x1x1xf32>
        %57 = vector.extract %56[0, 0, 0] : f32 from vector<1x1x1xf32>
        %58 = vector.broadcast %57 : f32 to vector<1x1xf32>
        %cst_24 = arith.constant 1.000000e+00 : f32
        %59 = vector.broadcast %cst_24 : f32 to vector<1x1xf32>
        %60 = arith.subf %58, %59 : vector<1x1xf32>
        %61 = arith.mulf %58, %60 : vector<1x1xf32>
        %cst_25 = arith.constant 5.000000e-01 : f32
        %62 = vector.broadcast %cst_25 : f32 to vector<1x1xf32>
        %63 = arith.mulf %61, %62 : vector<1x1xf32>
        %c0_26 = arith.constant 0 : index
        %c0_27 = arith.constant 0 : index
        %64 = vector.load %arg8[%c0_26, %c0_27] : memref<1x8xf32, #tpu.memory_space<vmem>>, vector<1x8xf32>
        %65 = arith.mulf %64, %53 : vector<1x8xf32>
        %66 = vector.shape_cast %65 : vector<1x8xf32> to vector<1x1x8xf32>
        %cst_28 = arith.constant dense<0.000000e+00> : vector<1xf32>
        %67 = vector.multi_reduction <add>, %66, %cst_28 [1, 2] : vector<1x1x8xf32> to vector<1xf32>
        %68 = vector.shape_cast %67 : vector<1xf32> to vector<1x1x1xf32>
        %69 = vector.extract %68[0, 0, 0] : f32 from vector<1x1x1xf32>
        %70 = vector.broadcast %69 : f32 to vector<1x1xf32>
        %71 = arith.divf %70, %58 : vector<1x1xf32>
        %c0_29 = arith.constant 0 : index
        %c0_30 = arith.constant 0 : index
        %72 = vector.load %arg7[%c0_29, %c0_30] : memref<4x8xf32, #tpu.memory_space<vmem>>, vector<4x8xf32>
        %73 = tpu.iota {dimensions = array<i32: 1>} : vector<1x8xi32>
        %cst_31 = arith.constant 0.000000e+00 : f32
        %74 = vector.broadcast %cst_31 : f32 to vector<1x1xf32>
        %75 = vector.extract_strided_slice %72 {offsets = [0, 0], sizes = [4, 1], strides = [1, 1]} : vector<4x8xf32> to vector<4x1xf32>
        %76 = vector.broadcast %75 : vector<4x1xf32> to vector<4x8xf32>
        %77 = arith.subf %72, %76 : vector<4x8xf32>
        %78 = arith.mulf %77, %77 : vector<4x8xf32>
        %cst_32 = arith.constant dense<0.000000e+00> : vector<8xf32>
        %79 = vector.multi_reduction <add>, %78, %cst_32 [0] : vector<4x8xf32> to vector<8xf32>
        %80 = vector.shape_cast %79 : vector<8xf32> to vector<1x8xf32>
        %81 = math.sqrt %80 : vector<1x8xf32>
        %c0_i32_33 = arith.constant 0 : i32
        %82 = vector.broadcast %c0_i32_33 : i32 to vector<1x8xi32>
        %83 = arith.cmpi ne, %73, %82 : vector<1x8xi32>
        %84 = arith.extui %83 : vector<1x8xi1> to vector<1x8xi32>
        %85 = arith.sitofp %84 : vector<1x8xi32> to vector<1x8xf32>
        %86 = arith.mulf %85, %49 : vector<1x8xf32>
        %87 = vector.extract_strided_slice %49 {offsets = [0, 0], sizes = [1, 1], strides = [1, 1]} : vector<1x8xf32> to vector<1x1xf32>
        %88 = vector.broadcast %87 : vector<1x1xf32> to vector<1x8xf32>
        %89 = arith.mulf %86, %88 : vector<1x8xf32>
        %cst_34 = arith.constant 2.000000e+00 : f32
        %90 = vector.broadcast %cst_34 : f32 to vector<1x8xf32>
        %91 = arith.subf %90, %81 : vector<1x8xf32>
        %cst_35 = arith.constant 0.000000e+00 : f32
        %92 = vector.broadcast %cst_35 : f32 to vector<1x8xf32>
        %93 = arith.maximumf %91, %92 : vector<1x8xf32>
        %94 = arith.mulf %93, %93 : vector<1x8xf32>
        %95 = arith.mulf %94, %89 : vector<1x8xf32>
        %96 = vector.shape_cast %95 : vector<1x8xf32> to vector<1x1x8xf32>
        %cst_36 = arith.constant dense<0.000000e+00> : vector<1xf32>
        %97 = vector.multi_reduction <add>, %96, %cst_36 [1, 2] : vector<1x1x8xf32> to vector<1xf32>
        %98 = vector.shape_cast %97 : vector<1xf32> to vector<1x1x1xf32>
        %99 = vector.extract %98[0, 0, 0] : f32 from vector<1x1x1xf32>
        %100 = vector.broadcast %99 : f32 to vector<1x1xf32>
        %101 = arith.addf %74, %100 : vector<1x1xf32>
        %102 = vector.extract_strided_slice %72 {offsets = [0, 1], sizes = [4, 1], strides = [1, 1]} : vector<4x8xf32> to vector<4x1xf32>
        %103 = vector.broadcast %102 : vector<4x1xf32> to vector<4x8xf32>
        %104 = arith.subf %72, %103 : vector<4x8xf32>
        %105 = arith.mulf %104, %104 : vector<4x8xf32>
        %cst_37 = arith.constant dense<0.000000e+00> : vector<8xf32>
        %106 = vector.multi_reduction <add>, %105, %cst_37 [0] : vector<4x8xf32> to vector<8xf32>
        %107 = vector.shape_cast %106 : vector<8xf32> to vector<1x8xf32>
        %108 = math.sqrt %107 : vector<1x8xf32>
        %c1_i32_38 = arith.constant 1 : i32
        %109 = vector.broadcast %c1_i32_38 : i32 to vector<1x8xi32>
        %110 = arith.cmpi ne, %73, %109 : vector<1x8xi32>
        %111 = arith.extui %110 : vector<1x8xi1> to vector<1x8xi32>
        %112 = arith.sitofp %111 : vector<1x8xi32> to vector<1x8xf32>
        %113 = arith.mulf %112, %49 : vector<1x8xf32>
        %114 = vector.extract_strided_slice %49 {offsets = [0, 1], sizes = [1, 1], strides = [1, 1]} : vector<1x8xf32> to vector<1x1xf32>
        %115 = vector.broadcast %114 : vector<1x1xf32> to vector<1x8xf32>
        %116 = arith.mulf %113, %115 : vector<1x8xf32>
        %cst_39 = arith.constant 2.000000e+00 : f32
        %117 = vector.broadcast %cst_39 : f32 to vector<1x8xf32>
        %118 = arith.subf %117, %108 : vector<1x8xf32>
        %cst_40 = arith.constant 0.000000e+00 : f32
        %119 = vector.broadcast %cst_40 : f32 to vector<1x8xf32>
        %120 = arith.maximumf %118, %119 : vector<1x8xf32>
        %121 = arith.mulf %120, %120 : vector<1x8xf32>
        %122 = arith.mulf %121, %116 : vector<1x8xf32>
        %123 = vector.shape_cast %122 : vector<1x8xf32> to vector<1x1x8xf32>
        %cst_41 = arith.constant dense<0.000000e+00> : vector<1xf32>
        %124 = vector.multi_reduction <add>, %123, %cst_41 [1, 2] : vector<1x1x8xf32> to vector<1xf32>
        %125 = vector.shape_cast %124 : vector<1xf32> to vector<1x1x1xf32>
        %126 = vector.extract %125[0, 0, 0] : f32 from vector<1x1x1xf32>
        %127 = vector.broadcast %126 : f32 to vector<1x1xf32>
        %128 = arith.addf %101, %127 : vector<1x1xf32>
        %129 = vector.extract_strided_slice %72 {offsets = [0, 2], sizes = [4, 1], strides = [1, 1]} : vector<4x8xf32> to vector<4x1xf32>
        %130 = vector.broadcast %129 : vector<4x1xf32> to vector<4x8xf32>
        %131 = arith.subf %72, %130 : vector<4x8xf32>
        %132 = arith.mulf %131, %131 : vector<4x8xf32>
        %cst_42 = arith.constant dense<0.000000e+00> : vector<8xf32>
        %133 = vector.multi_reduction <add>, %132, %cst_42 [0] : vector<4x8xf32> to vector<8xf32>
        %134 = vector.shape_cast %133 : vector<8xf32> to vector<1x8xf32>
        %135 = math.sqrt %134 : vector<1x8xf32>
        %c2_i32 = arith.constant 2 : i32
        %136 = vector.broadcast %c2_i32 : i32 to vector<1x8xi32>
        %137 = arith.cmpi ne, %73, %136 : vector<1x8xi32>
        %138 = arith.extui %137 : vector<1x8xi1> to vector<1x8xi32>
        %139 = arith.sitofp %138 : vector<1x8xi32> to vector<1x8xf32>
        %140 = arith.mulf %139, %49 : vector<1x8xf32>
        %141 = vector.extract_strided_slice %49 {offsets = [0, 2], sizes = [1, 1], strides = [1, 1]} : vector<1x8xf32> to vector<1x1xf32>
        %142 = vector.broadcast %141 : vector<1x1xf32> to vector<1x8xf32>
        %143 = arith.mulf %140, %142 : vector<1x8xf32>
        %cst_43 = arith.constant 2.000000e+00 : f32
        %144 = vector.broadcast %cst_43 : f32 to vector<1x8xf32>
        %145 = arith.subf %144, %135 : vector<1x8xf32>
        %cst_44 = arith.constant 0.000000e+00 : f32
        %146 = vector.broadcast %cst_44 : f32 to vector<1x8xf32>
        %147 = arith.maximumf %145, %146 : vector<1x8xf32>
        %148 = arith.mulf %147, %147 : vector<1x8xf32>
        %149 = arith.mulf %148, %143 : vector<1x8xf32>
        %150 = vector.shape_cast %149 : vector<1x8xf32> to vector<1x1x8xf32>
        %cst_45 = arith.constant dense<0.000000e+00> : vector<1xf32>
        %151 = vector.multi_reduction <add>, %150, %cst_45 [1, 2] : vector<1x1x8xf32> to vector<1xf32>
        %152 = vector.shape_cast %151 : vector<1xf32> to vector<1x1x1xf32>
        %153 = vector.extract %152[0, 0, 0] : f32 from vector<1x1x1xf32>
        %154 = vector.broadcast %153 : f32 to vector<1x1xf32>
        %155 = arith.addf %128, %154 : vector<1x1xf32>
        %156 = vector.extract_strided_slice %72 {offsets = [0, 3], sizes = [4, 1], strides = [1, 1]} : vector<4x8xf32> to vector<4x1xf32>
        %157 = vector.broadcast %156 : vector<4x1xf32> to vector<4x8xf32>
        %158 = arith.subf %72, %157 : vector<4x8xf32>
        %159 = arith.mulf %158, %158 : vector<4x8xf32>
        %cst_46 = arith.constant dense<0.000000e+00> : vector<8xf32>
        %160 = vector.multi_reduction <add>, %159, %cst_46 [0] : vector<4x8xf32> to vector<8xf32>
        %161 = vector.shape_cast %160 : vector<8xf32> to vector<1x8xf32>
        %162 = math.sqrt %161 : vector<1x8xf32>
        %c3_i32 = arith.constant 3 : i32
        %163 = vector.broadcast %c3_i32 : i32 to vector<1x8xi32>
        %164 = arith.cmpi ne, %73, %163 : vector<1x8xi32>
        %165 = arith.extui %164 : vector<1x8xi1> to vector<1x8xi32>
        %166 = arith.sitofp %165 : vector<1x8xi32> to vector<1x8xf32>
        %167 = arith.mulf %166, %49 : vector<1x8xf32>
        %168 = vector.extract_strided_slice %49 {offsets = [0, 3], sizes = [1, 1], strides = [1, 1]} : vector<1x8xf32> to vector<1x1xf32>
        %169 = vector.broadcast %168 : vector<1x1xf32> to vector<1x8xf32>
        %170 = arith.mulf %167, %169 : vector<1x8xf32>
        %cst_47 = arith.constant 2.000000e+00 : f32
        %171 = vector.broadcast %cst_47 : f32 to vector<1x8xf32>
        %172 = arith.subf %171, %162 : vector<1x8xf32>
        %cst_48 = arith.constant 0.000000e+00 : f32
        %173 = vector.broadcast %cst_48 : f32 to vector<1x8xf32>
        %174 = arith.maximumf %172, %173 : vector<1x8xf32>
        %175 = arith.mulf %174, %174 : vector<1x8xf32>
        %176 = arith.mulf %175, %170 : vector<1x8xf32>
        %177 = vector.shape_cast %176 : vector<1x8xf32> to vector<1x1x8xf32>
        %cst_49 = arith.constant dense<0.000000e+00> : vector<1xf32>
        %178 = vector.multi_reduction <add>, %177, %cst_49 [1, 2] : vector<1x1x8xf32> to vector<1xf32>
        %179 = vector.shape_cast %178 : vector<1xf32> to vector<1x1x1xf32>
        %180 = vector.extract %179[0, 0, 0] : f32 from vector<1x1x1xf32>
        %181 = vector.broadcast %180 : f32 to vector<1x1xf32>
        %182 = arith.addf %155, %181 : vector<1x1xf32>
        %183 = vector.extract_strided_slice %72 {offsets = [0, 4], sizes = [4, 1], strides = [1, 1]} : vector<4x8xf32> to vector<4x1xf32>
        %184 = vector.broadcast %183 : vector<4x1xf32> to vector<4x8xf32>
        %185 = arith.subf %72, %184 : vector<4x8xf32>
        %186 = arith.mulf %185, %185 : vector<4x8xf32>
        %cst_50 = arith.constant dense<0.000000e+00> : vector<8xf32>
        %187 = vector.multi_reduction <add>, %186, %cst_50 [0] : vector<4x8xf32> to vector<8xf32>
        %188 = vector.shape_cast %187 : vector<8xf32> to vector<1x8xf32>
        %189 = math.sqrt %188 : vector<1x8xf32>
        %c4_i32 = arith.constant 4 : i32
        %190 = vector.broadcast %c4_i32 : i32 to vector<1x8xi32>
        %191 = arith.cmpi ne, %73, %190 : vector<1x8xi32>
        %192 = arith.extui %191 : vector<1x8xi1> to vector<1x8xi32>
        %193 = arith.sitofp %192 : vector<1x8xi32> to vector<1x8xf32>
        %194 = arith.mulf %193, %49 : vector<1x8xf32>
        %195 = vector.extract_strided_slice %49 {offsets = [0, 4], sizes = [1, 1], strides = [1, 1]} : vector<1x8xf32> to vector<1x1xf32>
        %196 = vector.broadcast %195 : vector<1x1xf32> to vector<1x8xf32>
        %197 = arith.mulf %194, %196 : vector<1x8xf32>
        %cst_51 = arith.constant 2.000000e+00 : f32
        %198 = vector.broadcast %cst_51 : f32 to vector<1x8xf32>
        %199 = arith.subf %198, %189 : vector<1x8xf32>
        %cst_52 = arith.constant 0.000000e+00 : f32
        %200 = vector.broadcast %cst_52 : f32 to vector<1x8xf32>
        %201 = arith.maximumf %199, %200 : vector<1x8xf32>
        %202 = arith.mulf %201, %201 : vector<1x8xf32>
        %203 = arith.mulf %202, %197 : vector<1x8xf32>
        %204 = vector.shape_cast %203 : vector<1x8xf32> to vector<1x1x8xf32>
        %cst_53 = arith.constant dense<0.000000e+00> : vector<1xf32>
        %205 = vector.multi_reduction <add>, %204, %cst_53 [1, 2] : vector<1x1x8xf32> to vector<1xf32>
        %206 = vector.shape_cast %205 : vector<1xf32> to vector<1x1x1xf32>
        %207 = vector.extract %206[0, 0, 0] : f32 from vector<1x1x1xf32>
        %208 = vector.broadcast %207 : f32 to vector<1x1xf32>
        %209 = arith.addf %182, %208 : vector<1x1xf32>
        %210 = vector.extract_strided_slice %72 {offsets = [0, 5], sizes = [4, 1], strides = [1, 1]} : vector<4x8xf32> to vector<4x1xf32>
        %211 = vector.broadcast %210 : vector<4x1xf32> to vector<4x8xf32>
        %212 = arith.subf %72, %211 : vector<4x8xf32>
        %213 = arith.mulf %212, %212 : vector<4x8xf32>
        %cst_54 = arith.constant dense<0.000000e+00> : vector<8xf32>
        %214 = vector.multi_reduction <add>, %213, %cst_54 [0] : vector<4x8xf32> to vector<8xf32>
        %215 = vector.shape_cast %214 : vector<8xf32> to vector<1x8xf32>
        %216 = math.sqrt %215 : vector<1x8xf32>
        %c5_i32 = arith.constant 5 : i32
        %217 = vector.broadcast %c5_i32 : i32 to vector<1x8xi32>
        %218 = arith.cmpi ne, %73, %217 : vector<1x8xi32>
        %219 = arith.extui %218 : vector<1x8xi1> to vector<1x8xi32>
        %220 = arith.sitofp %219 : vector<1x8xi32> to vector<1x8xf32>
        %221 = arith.mulf %220, %49 : vector<1x8xf32>
        %222 = vector.extract_strided_slice %49 {offsets = [0, 5], sizes = [1, 1], strides = [1, 1]} : vector<1x8xf32> to vector<1x1xf32>
        %223 = vector.broadcast %222 : vector<1x1xf32> to vector<1x8xf32>
        %224 = arith.mulf %221, %223 : vector<1x8xf32>
        %cst_55 = arith.constant 2.000000e+00 : f32
        %225 = vector.broadcast %cst_55 : f32 to vector<1x8xf32>
        %226 = arith.subf %225, %216 : vector<1x8xf32>
        %cst_56 = arith.constant 0.000000e+00 : f32
        %227 = vector.broadcast %cst_56 : f32 to vector<1x8xf32>
        %228 = arith.maximumf %226, %227 : vector<1x8xf32>
        %229 = arith.mulf %228, %228 : vector<1x8xf32>
        %230 = arith.mulf %229, %224 : vector<1x8xf32>
        %231 = vector.shape_cast %230 : vector<1x8xf32> to vector<1x1x8xf32>
        %cst_57 = arith.constant dense<0.000000e+00> : vector<1xf32>
        %232 = vector.multi_reduction <add>, %231, %cst_57 [1, 2] : vector<1x1x8xf32> to vector<1xf32>
        %233 = vector.shape_cast %232 : vector<1xf32> to vector<1x1x1xf32>
        %234 = vector.extract %233[0, 0, 0] : f32 from vector<1x1x1xf32>
        %235 = vector.broadcast %234 : f32 to vector<1x1xf32>
        %236 = arith.addf %209, %235 : vector<1x1xf32>
        %237 = vector.extract_strided_slice %72 {offsets = [0, 6], sizes = [4, 1], strides = [1, 1]} : vector<4x8xf32> to vector<4x1xf32>
        %238 = vector.broadcast %237 : vector<4x1xf32> to vector<4x8xf32>
        %239 = arith.subf %72, %238 : vector<4x8xf32>
        %240 = arith.mulf %239, %239 : vector<4x8xf32>
        %cst_58 = arith.constant dense<0.000000e+00> : vector<8xf32>
        %241 = vector.multi_reduction <add>, %240, %cst_58 [0] : vector<4x8xf32> to vector<8xf32>
        %242 = vector.shape_cast %241 : vector<8xf32> to vector<1x8xf32>
        %243 = math.sqrt %242 : vector<1x8xf32>
        %c6_i32 = arith.constant 6 : i32
        %244 = vector.broadcast %c6_i32 : i32 to vector<1x8xi32>
        %245 = arith.cmpi ne, %73, %244 : vector<1x8xi32>
        %246 = arith.extui %245 : vector<1x8xi1> to vector<1x8xi32>
        %247 = arith.sitofp %246 : vector<1x8xi32> to vector<1x8xf32>
        %248 = arith.mulf %247, %49 : vector<1x8xf32>
        %249 = vector.extract_strided_slice %49 {offsets = [0, 6], sizes = [1, 1], strides = [1, 1]} : vector<1x8xf32> to vector<1x1xf32>
        %250 = vector.broadcast %249 : vector<1x1xf32> to vector<1x8xf32>
        %251 = arith.mulf %248, %250 : vector<1x8xf32>
        %cst_59 = arith.constant 2.000000e+00 : f32
        %252 = vector.broadcast %cst_59 : f32 to vector<1x8xf32>
        %253 = arith.subf %252, %243 : vector<1x8xf32>
        %cst_60 = arith.constant 0.000000e+00 : f32
        %254 = vector.broadcast %cst_60 : f32 to vector<1x8xf32>
        %255 = arith.maximumf %253, %254 : vector<1x8xf32>
        %256 = arith.mulf %255, %255 : vector<1x8xf32>
        %257 = arith.mulf %256, %251 : vector<1x8xf32>
        %258 = vector.shape_cast %257 : vector<1x8xf32> to vector<1x1x8xf32>
        %cst_61 = arith.constant dense<0.000000e+00> : vector<1xf32>
        %259 = vector.multi_reduction <add>, %258, %cst_61 [1, 2] : vector<1x1x8xf32> to vector<1xf32>
        %260 = vector.shape_cast %259 : vector<1xf32> to vector<1x1x1xf32>
        %261 = vector.extract %260[0, 0, 0] : f32 from vector<1x1x1xf32>
        %262 = vector.broadcast %261 : f32 to vector<1x1xf32>
        %263 = arith.addf %236, %262 : vector<1x1xf32>
        %264 = vector.extract_strided_slice %72 {offsets = [0, 7], sizes = [4, 1], strides = [1, 1]} : vector<4x8xf32> to vector<4x1xf32>
        %265 = vector.broadcast %264 : vector<4x1xf32> to vector<4x8xf32>
        %266 = arith.subf %72, %265 : vector<4x8xf32>
        %267 = arith.mulf %266, %266 : vector<4x8xf32>
        %cst_62 = arith.constant dense<0.000000e+00> : vector<8xf32>
        %268 = vector.multi_reduction <add>, %267, %cst_62 [0] : vector<4x8xf32> to vector<8xf32>
        %269 = vector.shape_cast %268 : vector<8xf32> to vector<1x8xf32>
        %270 = math.sqrt %269 : vector<1x8xf32>
        %c7_i32 = arith.constant 7 : i32
        %271 = vector.broadcast %c7_i32 : i32 to vector<1x8xi32>
        %272 = arith.cmpi ne, %73, %271 : vector<1x8xi32>
        %273 = arith.extui %272 : vector<1x8xi1> to vector<1x8xi32>
        %274 = arith.sitofp %273 : vector<1x8xi32> to vector<1x8xf32>
        %275 = arith.mulf %274, %49 : vector<1x8xf32>
        %276 = vector.extract_strided_slice %49 {offsets = [0, 7], sizes = [1, 1], strides = [1, 1]} : vector<1x8xf32> to vector<1x1xf32>
        %277 = vector.broadcast %276 : vector<1x1xf32> to vector<1x8xf32>
        %278 = arith.mulf %275, %277 : vector<1x8xf32>
        %cst_63 = arith.constant 2.000000e+00 : f32
        %279 = vector.broadcast %cst_63 : f32 to vector<1x8xf32>
        %280 = arith.subf %279, %270 : vector<1x8xf32>
        %cst_64 = arith.constant 0.000000e+00 : f32
        %281 = vector.broadcast %cst_64 : f32 to vector<1x8xf32>
        %282 = arith.maximumf %280, %281 : vector<1x8xf32>
        %283 = arith.mulf %282, %282 : vector<1x8xf32>
        %284 = arith.mulf %283, %278 : vector<1x8xf32>
        %285 = vector.shape_cast %284 : vector<1x8xf32> to vector<1x1x8xf32>
        %cst_65 = arith.constant dense<0.000000e+00> : vector<1xf32>
        %286 = vector.multi_reduction <add>, %285, %cst_65 [1, 2] : vector<1x1x8xf32> to vector<1xf32>
        %287 = vector.shape_cast %286 : vector<1xf32> to vector<1x1x1xf32>
        %288 = vector.extract %287[0, 0, 0] : f32 from vector<1x1x1xf32>
        %289 = vector.broadcast %288 : f32 to vector<1x1xf32>
        %290 = arith.addf %263, %289 : vector<1x1xf32>
        %cst_66 = arith.constant 0.000000e+00 : f32
        %291 = vector.broadcast %cst_66 : f32 to vector<1x1xf32>
        %292 = arith.cmpf ogt, %63, %291 : vector<1x1xf32>
        %cst_67 = arith.constant 5.000000e-01 : f32
        %293 = vector.broadcast %cst_67 : f32 to vector<1x1xf32>
        %294 = arith.mulf %290, %293 : vector<1x1xf32>
        %cst_68 = arith.constant 1.000000e+00 : f32
        %295 = vector.broadcast %cst_68 : f32 to vector<1x1xf32>
        %296 = arith.maximumf %63, %295 : vector<1x1xf32>
        %297 = arith.divf %294, %296 : vector<1x1xf32>
        %cst_69 = arith.constant 0.000000e+00 : f32
        %298 = vector.broadcast %cst_69 : f32 to vector<1x1xf32>
        %299 = arith.select %292, %297, %298 : vector<1x1xi1>, vector<1x1xf32>
        %300 = arith.mulf %72, %72 : vector<4x8xf32>
        %cst_70 = arith.constant dense<0.000000e+00> : vector<8xf32>
        %301 = vector.multi_reduction <add>, %300, %cst_70 [0] : vector<4x8xf32> to vector<8xf32>
        %302 = vector.shape_cast %301 : vector<8xf32> to vector<1x8xf32>
        %303 = math.sqrt %302 : vector<1x8xf32>
        %cst_71 = arith.constant 2.000000e+00 : f32
        %304 = vector.broadcast %cst_71 : f32 to vector<1x8xf32>
        %305 = arith.subf %303, %304 : vector<1x8xf32>
        %cst_72 = arith.constant 0.000000e+00 : f32
        %306 = vector.broadcast %cst_72 : f32 to vector<1x8xf32>
        %307 = arith.maximumf %305, %306 : vector<1x8xf32>
        %308 = arith.mulf %307, %307 : vector<1x8xf32>
        %309 = vector.shape_cast %308 : vector<1x8xf32> to vector<1x1x8xf32>
        %cst_73 = arith.constant dense<0.000000e+00> : vector<1xf32>
        %310 = vector.multi_reduction <add>, %309, %cst_73 [1, 2] : vector<1x1x8xf32> to vector<1xf32>
        %311 = vector.shape_cast %310 : vector<1xf32> to vector<1x1x1xf32>
        %312 = vector.extract %311[0, 0, 0] : f32 from vector<1x1x1xf32>
        %313 = vector.broadcast %312 : f32 to vector<1x1xf32>
        %314 = arith.divf %313, %58 : vector<1x1xf32>
        %cst_74 = arith.constant 1.000000e+00 : f32
        %315 = vector.broadcast %cst_74 : f32 to vector<1x1xf32>
        %316 = arith.mulf %315, %71 : vector<1x1xf32>
        %cst_75 = arith.constant 1.000000e+00 : f32
        %317 = vector.broadcast %cst_75 : f32 to vector<1x1xf32>
        %318 = arith.mulf %317, %299 : vector<1x1xf32>
        %319 = arith.addf %316, %318 : vector<1x1xf32>
        %cst_76 = arith.constant 1.000000e+00 : f32
        %320 = vector.broadcast %cst_76 : f32 to vector<1x1xf32>
        %321 = arith.mulf %320, %314 : vector<1x1xf32>
        %322 = arith.addf %319, %321 : vector<1x1xf32>
        %c0_77 = arith.constant 0 : index
        %c0_78 = arith.constant 0 : index
        %c0_79 = arith.constant 0 : index
        %323 = vector.load %arg5[%c0_77, %c0_78, %c0_79] : memref<1x1x1xf32, #tpu.memory_space<vmem>>, vector<1x1x1xf32>
        %324 = vector.shape_cast %323 : vector<1x1x1xf32> to vector<1x1xf32>
        %325 = vector.shape_cast %322 : vector<1x1xf32> to vector<1x1x1xf32>
        tpu.vector_store %arg5[%c0_77, %c0_78, %c0_79], %325 {strides = array<i32>} : memref<1x1x1xf32, #tpu.memory_space<vmem>>, vector<1x1x1xf32>,
      } else {
      }
    } else {
    }
    return
  }
  func.func @transform_0(%arg0: i32, %arg1: i32, %arg2: i32) -> (i32, i32, i32) {
    %c1_i32 = arith.constant 1 : i32
    %0 = arith.subi %c1_i32, %arg1 : i32
    %1 = arith.muli %arg2, %0 : i32
    %c0_i32 = arith.constant 0 : i32
    %c0_i32_0 = arith.constant 0 : i32
    return %arg0, %c0_i32, %1 : i32, i32, i32
  }
  func.func @transform_1(%arg0: i32, %arg1: i32, %arg2: i32) -> (i32, i32, i32) {
    %c1_i32 = arith.constant 1 : i32
    %0 = arith.subi %c1_i32, %arg1 : i32
    %1 = arith.muli %arg2, %0 : i32
    %c0_i32 = arith.constant 0 : i32
    %c0_i32_0 = arith.constant 0 : i32
    return %arg0, %c0_i32, %1 : i32, i32, i32
  }
  func.func @transform_2(%arg0: i32, %arg1: i32, %arg2: i32) -> (i32, i32, i32) {
    %c0_i32 = arith.constant 0 : i32
    %c0_i32_0 = arith.constant 0 : i32
    %c0_i32_1 = arith.constant 0 : i32
    return %arg0, %c0_i32, %c0_i32_0 : i32, i32, i32
  }
}

</mosaic_0001>

<llo_original>
// kernel: tpu_custom_call.1
$region0: #{tpu_custom_call.1}
  #allocation0 [shape = 'u32[]', space=smem, size = 0x4, offset = 0x4, fixed_abs, tag = 'smem constant byte address 0x4 - core index']
  #allocation1 [shape = 'u32[144,128]{1,0:T(1,128)}', space=vmem, size = 0x12000, scoped, tag = 'internal scratch']
  #allocation2 [shape = 'f32[1,8]{1,0:T(1,128)}', space=vmem, size = 0x200, scoped, tag = 'scratch operand']
  #allocation3 [shape = 'f32[4,8]{1,0:T(4,128)}', space=vmem, size = 0x800, scoped, tag = 'scratch operand']
  #allocation4 [shape = 'f32[1,8]{1,0:T(1,128)}', space=vmem, size = 0x200, scoped, tag = 'scratch operand']
  #allocation5 [shape = 'f32[5,256]{1,0:T(8,128)}', space=vmem, size = 0x2000, scoped, tag = 'scratch operand']
  %s0 = inlined_call_operand.hbm [shape: s32[2,1,256], index: 0, kind: input, shape index: {}]
  %s1 = inlined_call_operand.hbm [shape: f32[2,4,256], index: 1, kind: input, shape index: {}]
  %s2 = inlined_call_operand.vmem [shape: f32[2,1,1], index: 2, kind: output, shape index: {}]
  %s3 = sld [smem:[#allocation0]]
  $region69: #{tpu_custom_call.1} parent=0
    _
  %s5 = ssub.s32 1, %s3
  %s6 = scalar_select 0, %s5, %s3
  $region1: #{tpu_custom_call.1} parent=0
    #allocation6 [shape = 'u8[1024]{0}', space=vmem, size = 0x400, scoped, tag = 'input window, operand 0']
    #allocation7 [shape = 's32[2]{0}', space=sflag, size = 0x8, scoped, tag = 'scoped memory for tpu_custom_call.1']
    #allocation8 [shape = 'u8[4096]{0}', space=vmem, size = 0x1000, scoped, tag = 'input window, operand 1']
    #allocation9 [shape = 's32[2]{0}', space=sflag, size = 0x8, scoped, tag = 'scoped memory for tpu_custom_call.1']
    %7 = vsyncpa [#allocation7], 0
    %s8 = scalar_lea.sflag [#allocation7], 1
    %9 = vsyncpa %s8, 0
    %10 = vsyncpa [#allocation9], 0
    %s11 = scalar_lea.sflag [#allocation9], 1
    %12 = vsyncpa %s11, 0
    loop: start=0, step=1, limit=10
    $region2: #{tpu_custom_call.1} parent=1 // loop_pre_header
      _
    $region3: #{tpu_custom_call.1} parent=1 // loop_header
      %s14 = sphi 0, %s18
      %p15 = scmp.ge.s32.totalorder %s14, 10
      %s21 = sphi 0, %s40
      %s22 = sphi 0, %s36
      %s23 = sphi 0, %s32
      %s24 = sphi 0, %s21
      %s25 = sphi 0, %s22
      %s26 = sphi 0, %s23
      %s27 = sphi 0, %s24
      %s28 = sphi 0, %s25
      %s29 = sphi 0, %s26
      %s49 = sphi 0, %s51
      %s52 = sphi 0, %s49
      %s53 = sphi 0, %s52
      %s69 = sphi 0, %s53
      %s81 = sphi 0, %s83
      %s84 = sphi 0, %s81
      %s85 = sphi 0, %s84
      %s101 = sphi 0, %s85
      %s107 = sphi 0, %s109
      %s110 = sphi 0, %s107
      %s111 = sphi 0, %s110
      %s127 = sphi 0, %s111
    $region4: #{tpu_custom_call.1} parent=1 // loop_header_branch
      %17 = sbr.rel (%p15) target = $region8
    $region5: #{tpu_custom_call.1} parent=1 // loop_body
      %s19 = ssub.s32 %s14, 1
      %s20 = ssub.s32 %s14, 2
      %s30 = sadd.s32 1, %s23
      %p31 = scmp.ge.s32.totalorder %s30, 2
      %s32 = scalar_select %p31, 0, %s30
      %s33 = sadd.s32 1, %s22
      %s34 = scalar_select %p31, %s33, %s22
      %p35 = scmp.ge.s32.totalorder %s34, 2
      %s36 = scalar_select %p35, 0, %s34
      %s37 = sadd.s32 1, %s21
      %s38 = scalar_select %p35, %s37, %s21
      %p39 = scmp.ge.s32.totalorder %s38, 2
      %s40 = scalar_select %p39, 0, %s38
      %s41 = ssub.s32 1, %s22
      %s42 = smul.u32 %s23, %s41
      %s43 = ssub.s32 1, %s36
      %s44 = smul.u32 %s32, %s43
      %s45 = ssub.s32 %s21, %s40
      %s46 = ssub.s32 %s42, %s44
      %s47 = sor.u32 %s45, %s46
      %p48 = scmp.eq.s32.totalorder %s47, 0
      %s50 = sadd.s32 %s49, 1
      %s51 = scalar_select %p48, %s49, %s50
      %p54 = pneg %p48
      %p55 = scmp.eq.s32.totalorder %s14, 7
      %p56 = por %p54, %p55
      %p57 = scmp.ne.s32.totalorder %s49, %s52
      %p58 = scmp.eq.s32.totalorder %s14, 0
      %p59 = por %p57, %p58
      %p60 = scmp.ne.s32.totalorder %s49, %s52
      %p61 = scmp.eq.s32.totalorder %s19, 7
      %p62 = por %p60, %p61
      %p63 = scmp.ne.s32.totalorder %s52, %s53
      %p64 = scmp.eq.s32.totalorder %s19, 0
      %p65 = por %p63, %p64
      %p66 = scmp.ne.s32.totalorder %s52, %s53
      %p67 = scmp.eq.s32.totalorder %s20, 7
      %p68 = por %p66, %p67
      %p70 = scmp.ne.s32.totalorder %s53, %s69
      %p71 = scmp.eq.s32.totalorder %s20, 0
      %p72 = por %p70, %p71
      %s73 = ssub.s32 1, %s22
      %s74 = smul.u32 %s23, %s73
      %s75 = ssub.s32 1, %s36
      %s76 = smul.u32 %s32, %s75
      %s77 = ssub.s32 %s21, %s40
      %s78 = ssub.s32 %s74, %s76
      %s79 = sor.u32 %s77, %s78
      %p80 = scmp.eq.s32.totalorder %s79, 0
      %s82 = sadd.s32 %s81, 1
      %s83 = scalar_select %p80, %s81, %s82
      %p86 = pneg %p80
      %p87 = scmp.eq.s32.totalorder %s14, 7
      %p88 = por %p86, %p87
      %p89 = scmp.ne.s32.totalorder %s81, %s84
      %p90 = scmp.eq.s32.totalorder %s14, 0
      %p91 = por %p89, %p90
      %p92 = scmp.ne.s32.totalorder %s81, %s84
      %p93 = scmp.eq.s32.totalorder %s19, 7
      %p94 = por %p92, %p93
      %p95 = scmp.ne.s32.totalorder %s84, %s85
      %p96 = scmp.eq.s32.totalorder %s19, 0
      %p97 = por %p95, %p96
      %p98 = scmp.ne.s32.totalorder %s84, %s85
      %p99 = scmp.eq.s32.totalorder %s20, 7
      %p100 = por %p98, %p99
      %p102 = scmp.ne.s32.totalorder %s85, %s101
      %p103 = scmp.eq.s32.totalorder %s20, 0
      %p104 = por %p102, %p103
      %s105 = ssub.s32 %s21, %s40
      %p106 = scmp.eq.s32.totalorder %s105, 0
      %s108 = sadd.s32 %s107, 1
      %s109 = scalar_select %p106, %s107, %s108
      %p112 = pneg %p106
      %p113 = scmp.eq.s32.totalorder %s14, 7
      %p114 = por %p112, %p113
      %p115 = scmp.ne.s32.totalorder %s107, %s110
      %p116 = scmp.eq.s32.totalorder %s14, 0
      %p117 = por %p115, %p116
      %p118 = scmp.ne.s32.totalorder %s107, %s110
      %p119 = scmp.eq.s32.totalorder %s19, 7
      %p120 = por %p118, %p119
      %p121 = scmp.ne.s32.totalorder %s110, %s111
      %p122 = scmp.eq.s32.totalorder %s19, 0
      %p123 = por %p121, %p122
      %p124 = scmp.ne.s32.totalorder %s110, %s111
      %p125 = scmp.eq.s32.totalorder %s20, 7
      %p126 = por %p124, %p125
      %p128 = scmp.ne.s32.totalorder %s111, %s127
      %p129 = scmp.eq.s32.totalorder %s20, 0
      %p130 = por %p128, %p129
      %p131 = scmp.le.s32.totalorder 1, %s14
      %p132 = scmp.lt.s32.totalorder %s14, 9
      %p133 = pnand %p131, %p132
      %p134 = pneg %p133
      // Predicated region
      $region9: #{tpu_custom_call.1} parent=5 // pred_check
        _
      $region10: #{tpu_custom_call.1} parent=5 // pred_check_branch
        %136 = sbr.rel (%p133) target = $region12
      $region11: #{tpu_custom_call.1} parent=5 // pred_region
        %s137 = ssub.s32 %s14, 1
      $region12: #{tpu_custom_call.1} parent=5 // pred_fallthru
        _
      %p138 = scmp.lt.s32.totalorder %s14, 8
      // Predicated region
      $region13: #{tpu_custom_call.1} parent=5 // pred_check
        %p139 = pneg %p138
      $region14: #{tpu_custom_call.1} parent=5 // pred_check_branch
        %141 = sbr.rel (%p139) target = $region16
      $region15: #{tpu_custom_call.1} parent=5 // pred_region
        // Predicated region
        $region17: #{tpu_custom_call.1} parent=15 // pred_check
          %p142 = pneg %p59
        $region18: #{tpu_custom_call.1} parent=15 // pred_check_branch
          %144 = sbr.rel (%p142) target = $region20
        $region19: #{tpu_custom_call.1} parent=15 // pred_region
          %s145 = sand.u32 %s49, 1
          %s146 = scalar_lea.sflag [#allocation7], %s145
          %s147 = sand.u32 %s49, 1
          %s148 = scalar_lea.vmem [#allocation6], %s147
          %s149 = ssub.s32 1, %s22
          %s150 = smul.u32 %s23, %s149
          %s152 = ssub.s32 16, 16
          %153 = vsyncadd %s146, %s152
          %s154 = smul.addr %s21, 2
          %s155 = sadd.s32 %s150, %s154
          %s156 = smul.addr %s155, 16
          %s157 = scalar_lea.hbm %s0, %s156
          %s159 = sshll.u32 %s148, 4
          %s160 = int_to_ptr.vmem [resolvable:$true] %s159
          %162 = dma.hbm_to_vmem [thread:$0]  %s157, 16, %s160, %s146
        $region20: #{tpu_custom_call.1} parent=15 // pred_fallthru
          _
        // Predicated region
        $region21: #{tpu_custom_call.1} parent=15 // pred_check
          %p163 = pneg %p91
        $region22: #{tpu_custom_call.1} parent=15 // pred_check_branch
          %165 = sbr.rel (%p163) target = $region24
        $region23: #{tpu_custom_call.1} parent=15 // pred_region
          %s166 = sand.u32 %s81, 1
          %s167 = scalar_lea.sflag [#allocation9], %s166
          %s168 = sand.u32 %s81, 1
          %s169 = smul.addr %s168, 4
          %s170 = scalar_lea.vmem [#allocation8], %s169
          %s171 = ssub.s32 1, %s22
          %s172 = smul.u32 %s23, %s171
          %s174 = ssub.s32 64, 64
          %175 = vsyncadd %s167, %s174
          %s176 = smul.addr %s21, 2
          %s177 = sadd.s32 %s172, %s176
          %s178 = smul.addr %s177, 64
          %s179 = scalar_lea.hbm %s1, %s178
          %s181 = sshll.u32 %s170, 4
          %s182 = int_to_ptr.vmem [resolvable:$true] %s181
          %184 = dma.hbm_to_vmem [thread:$0]  %s179, 64, %s182, %s167
        $region24: #{tpu_custom_call.1} parent=15 // pred_fallthru
          _
      $region16: #{tpu_custom_call.1} parent=5 // pred_fallthru
        _
      %p185 = scmp.le.s32.totalorder 1, %s14
      %p186 = scmp.lt.s32.totalorder %s14, 9
      %p187 = pnand %p185, %p186
      %p188 = pneg %p187
      // Predicated region
      $region25: #{tpu_custom_call.1} parent=5 // pred_check
        _
      $region26: #{tpu_custom_call.1} parent=5 // pred_check_branch
        %190 = sbr.rel (%p187) target = $region28
      $region27: #{tpu_custom_call.1} parent=5 // pred_region
        %s191 = ssub.s32 %s14, 1
        %s192 = sand.u32 %s52, 1
        %s193 = scalar_lea.sflag [#allocation7], %s192
        %s194 = sand.u32 %s52, 1
        %s195 = scalar_lea.vmem [#allocation6], %s194
        // Predicated region
        $region29: #{tpu_custom_call.1} parent=27 // pred_check
          %p196 = pneg %p65
        $region30: #{tpu_custom_call.1} parent=27 // pred_check_branch
          %198 = sbr.rel (%p196) target = $region32
        $region31: #{tpu_custom_call.1} parent=27 // pred_region
          %199 = dma.done %s193, 16
        $region32: #{tpu_custom_call.1} parent=27 // pred_fallthru
          _
        %s200 = sand.u32 %s84, 1
        %s201 = scalar_lea.sflag [#allocation9], %s200
        %s202 = sand.u32 %s84, 1
        %s203 = smul.addr %s202, 4
        %s204 = scalar_lea.vmem [#allocation8], %s203
        // Predicated region
        $region33: #{tpu_custom_call.1} parent=27 // pred_check
          %p205 = pneg %p97
        $region34: #{tpu_custom_call.1} parent=27 // pred_check_branch
          %207 = sbr.rel (%p205) target = $region36
        $region35: #{tpu_custom_call.1} parent=27 // pred_region
          %208 = dma.done %s201, 64
        $region36: #{tpu_custom_call.1} parent=27 // pred_fallthru
          _
        %s209 = sand.u32 %s52, 1
        %s210 = scalar_lea.sflag [#allocation7], %s209
        %s211 = sand.u32 %s52, 1
        %s212 = scalar_lea.vmem [#allocation6], %s211
        %p213 = pneg %p65
        %p214 = pneg %p62
        %s215 = sand.u32 %s84, 1
        %s216 = scalar_lea.sflag [#allocation9], %s215
        %s217 = sand.u32 %s84, 1
        %s218 = smul.addr %s217, 4
        %s219 = scalar_lea.vmem [#allocation8], %s218
        %p220 = pneg %p97
        %p221 = pneg %p94
        %p222 = pneg %p123
        %p223 = pneg %p120
        %p224 = scmp.lt.s32.totalorder %s24, 1
        %s225 = scalar_select %p224, %s24, 1
        %s226 = scalar_lea.vmem %s2, %s225
        %s227 = ssub.s32 1, %s25
        %s228 = smul.u32 %s26, %s227
        %s229 = ssub.s32 1, %s25
        %s230 = smul.u32 %s26, %s229
        %p231 = scmp.lt.s32.totalorder %s24, 1
        %s232 = scalar_select %p231, %s24, 1
        %s233 = scalar_lea.vmem %s2, %s232
        %v234 = vlaneseq
        %v235 = vshrl.u32 %v234, 7
        %p236 = scmp.eq.s32.totalorder %s25, 0
        %p237 = scmp.eq.s32.totalorder %s26, 0
        %p238 = pnand %p236, %p237
        %p239 = pneg %p238
        // Predicated region
        $region37: #{tpu_custom_call.1} parent=27 // pred_check
          _
        $region38: #{tpu_custom_call.1} parent=27 // pred_check_branch
          %241 = sbr.rel (%p238) target = $region40
        $region39: #{tpu_custom_call.1} parent=27 // pred_region
          %vm242 = vcmask 57344
          %243 = vst.msk [vmem:[#allocation2] sm:$0x1] %vm242, 0.0
          %vm244 = vcmask 60416
          %245 = vst.msk [vmem:[#allocation3] sm:$0xf] %vm244, 0.0
          %246 = vst.msk [vmem:[#allocation4] sm:$0x1] %vm242, 0.0
        $region40: #{tpu_custom_call.1} parent=27 // pred_fallthru
          _
        // Predicated region
        $region41: #{tpu_custom_call.1} parent=27 // pred_check
          %p247 = pneg %p236
        $region42: #{tpu_custom_call.1} parent=27 // pred_check_branch
          %249 = sbr.rel (%p247) target = $region44
        $region43: #{tpu_custom_call.1} parent=27 // pred_region
          %v250 = vld [vmem:[%s195] sm:$0x1]
          %v251 = vld [vmem:[%s204] sm:$0xf]
          %s252 = smul.u32 %s26, 128
          %s253 = sshra.s32 %s252, 7
          %s254 = sand.u32 %s252, 127
          %s255 = smul.addr %s253, 8
          %s256 = scalar_lea.vmem [#allocation5], %s255
          %257 = vst [vmem:[%s256] sm:$0xf] %v251
          %v258 = vcvt.s32.f32 %v250
          %259 = vst [vmem:[%s256 + $0x4] sm:$0x1] %v258
          %v260 = vlaneseq
          %v261 = vshrl.u32 %v260, 7
          %v262 = vsub.s32 0, %v261
          %v263 = vrot.slane %v250, %v262
          %vm264 = vcmp.eq.s32.totalorder %v263, %v235
          %v265 = vsel %vm264, 1, 0
          %v266 = vcvt.s32.f32 %v265
          %v267 = vld [vmem:[#allocation2] sm:$0x1]
          %268 = vmatprep.subr.mxu0 0.0
          %269 = vmatpush1.xpose.msra.mxu0 0.0
          %270 = vmatprep.subr.mxu0 0.0
          %271 = vmatpush1.xpose.msra.mxu0 0.0
          %272 = vmatprep.subr.mxu0 0.0
          %273 = vmatpush1.xpose.msra.mxu0 0.0
          %274 = vmatprep.subr.mxu0 0.0
          %275 = vmatpush1.xpose.msra.mxu0 0.0
          %276 = vmatprep.subr.mxu0 0.0
          %277 = vmatpush1.xpose.msra.mxu0 0.0
          %278 = vmatprep.subr.mxu0 0.0
          %279 = vmatpush1.xpose.msra.mxu0 0.0
          %280 = vmatprep.subr.mxu0 0.0
          %281 = vmatpush1.xpose.msra.mxu0 0.0
          %282 = vmatprep.subr.mxu0 0.0
          %283 = vmatpush1.xpose.msra.mxu0 0.0
          %284 = vmatprep.subr.mxu0 0.0
          %285 = vmatpush1.xpose.msra.mxu0 0.0
          %286 = vmatprep.subr.mxu0 0.0
          %287 = vmatpush1.xpose.msra.mxu0 0.0
          %288 = vmatprep.subr.mxu0 0.0
          %289 = vmatpush1.xpose.msra.mxu0 0.0
          %290 = vmatprep.subr.mxu0 0.0
          %291 = vmatpush1.xpose.msra.mxu0 0.0
          %292 = vmatprep.subr.mxu0 0.0
          %293 = vmatpush1.xpose.msra.mxu0 0.0
          %294 = vmatprep.subr.mxu0 0.0
          %295 = vmatpush1.xpose.msra.mxu0 0.0
          %296 = vmatprep.subr.mxu0 0.0
          %297 = vmatpush1.xpose.msra.mxu0 0.0
          %298 = vmatprep.subr.mxu0 0.0
          %299 = vmatpush1.xpose.msra.mxu0 %v266
          %300 = vmatprep.subr.mxu0 0.0
          %301 = vmatpush2.xpose.msra.mxu0 0.0
          %302 = vmatprep.subr.mxu0 0.0
          %303 = vmatpush2.xpose.msra.mxu0 0.0
          %304 = vmatprep.subr.mxu0 0.0
          %305 = vmatpush2.xpose.msra.mxu0 0.0
          %306 = vmatprep.subr.mxu0 0.0
          %307 = vmatpush2.xpose.msra.mxu0 0.0
          %308 = vmatprep.subr.mxu0 0.0
          %309 = vmatpush2.xpose.msra.mxu0 0.0
          %310 = vmatprep.subr.mxu0 0.0
          %311 = vmatpush2.xpose.msra.mxu0 0.0
          %312 = vmatprep.subr.mxu0 0.0
          %313 = vmatpush2.xpose.msra.mxu0 0.0
          %314 = vmatprep.subr.mxu0 0.0
          %315 = vmatpush2.xpose.msra.mxu0 0.0
          %316 = vmatprep.subr.mxu0 0.0
          %317 = vmatpush2.xpose.msra.mxu0 0.0
          %318 = vmatprep.subr.mxu0 0.0
          %319 = vmatpush2.xpose.msra.mxu0 0.0
          %320 = vmatprep.subr.mxu0 0.0
          %321 = vmatpush2.xpose.msra.mxu0 0.0
          %322 = vmatprep.subr.mxu0 0.0
          %323 = vmatpush2.xpose.msra.mxu0 0.0
          %324 = vmatprep.subr.mxu0 0.0
          %325 = vmatpush2.xpose.msra.mxu0 0.0
          %326 = vmatprep.subr.mxu0 0.0
          %327 = vmatpush2.xpose.msra.mxu0 0.0
          %328 = vmatprep.subr.mxu0 0.0
          %329 = vmatpush2.xpose.msra.mxu0 0.0
          %330 = vmatprep.subr.mxu0 0.0
          %331 = vmatpush2.xpose.msra.mxu0 0.0
          %332 = vmatprep.mubr.f32.mxu0 0.0
          %333 = vmatmul.mubr.f32.gmra.mxu0 1.0
          %v334 = vpop.f32.mrf.mxu0
          %v335 = vadd.f32 0.0, %v334
          %v336 = vpop.f32.mrf.mxu0
          %337 = vdwg.mxu0
          %v338 = vadd.f32 %v267, %v335
          %vm339 = vcmask 57344
          %340 = vst.msk [vmem:[#allocation2] sm:$0x1] %vm339, %v338
          %v341 = vld [vmem:[#allocation3] sm:$0xf]
          %342 = vmatprep.subr.mxu0 0.0
          %343 = vmatpush1.xpose.msra.mxu0 0.0
          %344 = vmatprep.subr.mxu0 0.0
          %345 = vmatpush1.xpose.msra.mxu0 0.0
          %346 = vmatprep.subr.mxu0 0.0
          %347 = vmatpush1.xpose.msra.mxu0 0.0
          %348 = vmatprep.subr.mxu0 0.0
          %349 = vmatpush1.xpose.msra.mxu0 0.0
          %350 = vmatprep.subr.mxu0 0.0
          %351 = vmatpush1.xpose.msra.mxu0 0.0
          %352 = vmatprep.subr.mxu0 0.0
          %353 = vmatpush1.xpose.msra.mxu0 0.0
          %354 = vmatprep.subr.mxu0 0.0
          %355 = vmatpush1.xpose.msra.mxu0 0.0
          %356 = vmatprep.subr.mxu0 0.0
          %357 = vmatpush1.xpose.msra.mxu0 0.0
          %358 = vmatprep.subr.mxu0 0.0
          %359 = vmatpush1.xpose.msra.mxu0 0.0
          %360 = vmatprep.subr.mxu0 0.0
          %361 = vmatpush1.xpose.msra.mxu0 0.0
          %362 = vmatprep.subr.mxu0 0.0
          %363 = vmatpush1.xpose.msra.mxu0 0.0
          %364 = vmatprep.subr.mxu0 0.0
          %365 = vmatpush1.xpose.msra.mxu0 0.0
          %366 = vmatprep.subr.mxu0 0.0
          %367 = vmatpush1.xpose.msra.mxu0 0.0
          %368 = vmatprep.subr.mxu0 0.0
          %369 = vmatpush1.xpose.msra.mxu0 0.0
          %370 = vmatprep.subr.mxu0 0.0
          %371 = vmatpush1.xpose.msra.mxu0 0.0
          %372 = vmatprep.subr.mxu0 0.0
          %373 = vmatpush1.xpose.msra.mxu0 %v266
          %374 = vmatprep.subr.mxu0 0.0
          %375 = vmatpush2.xpose.msra.mxu0 0.0
          %376 = vmatprep.subr.mxu0 0.0
          %377 = vmatpush2.xpose.msra.mxu0 0.0
          %378 = vmatprep.subr.mxu0 0.0
          %379 = vmatpush2.xpose.msra.mxu0 0.0
          %380 = vmatprep.subr.mxu0 0.0
          %381 = vmatpush2.xpose.msra.mxu0 0.0
          %382 = vmatprep.subr.mxu0 0.0
          %383 = vmatpush2.xpose.msra.mxu0 0.0
          %384 = vmatprep.subr.mxu0 0.0
          %385 = vmatpush2.xpose.msra.mxu0 0.0
          %386 = vmatprep.subr.mxu0 0.0
          %387 = vmatpush2.xpose.msra.mxu0 0.0
          %388 = vmatprep.subr.mxu0 0.0
          %389 = vmatpush2.xpose.msra.mxu0 0.0
          %390 = vmatprep.subr.mxu0 0.0
          %391 = vmatpush2.xpose.msra.mxu0 0.0
          %392 = vmatprep.subr.mxu0 0.0
          %393 = vmatpush2.xpose.msra.mxu0 0.0
          %394 = vmatprep.subr.mxu0 0.0
          %395 = vmatpush2.xpose.msra.mxu0 0.0
          %396 = vmatprep.subr.mxu0 0.0
          %397 = vmatpush2.xpose.msra.mxu0 0.0
          %398 = vmatprep.subr.mxu0 0.0
          %399 = vmatpush2.xpose.msra.mxu0 0.0
          %400 = vmatprep.subr.mxu0 0.0
          %401 = vmatpush2.xpose.msra.mxu0 0.0
          %402 = vmatprep.subr.mxu0 0.0
          %403 = vmatpush2.xpose.msra.mxu0 0.0
          %404 = vmatprep.subr.mxu0 0.0
          %405 = vmatpush2.xpose.msra.mxu0 0.0
          %406 = vmatprep.mubr.f32.mxu0 0.0
          %407 = vmatmul.mubr.f32.gmra.mxu0 %v251
          %v408 = vpop.f32.mrf.mxu0
          %v409 = vadd.f32 0.0, %v408
          %v410 = vpop.f32.mrf.mxu0
          %411 = vdwg.mxu0
          %v412 = vadd.f32 %v341, %v409
          %vm413 = vcmask 60416
          %414 = vst.msk [vmem:[#allocation3] sm:$0xf] %vm413, %v412
        $region44: #{tpu_custom_call.1} parent=27 // pred_fallthru
          _
        %p415 = scmp.eq.s32.totalorder %s25, 1
        // Predicated region
        $region45: #{tpu_custom_call.1} parent=27 // pred_check
          %p416 = pneg %p415
        $region46: #{tpu_custom_call.1} parent=27 // pred_check_branch
          %418 = sbr.rel (%p416) target = $region48
        $region47: #{tpu_custom_call.1} parent=27 // pred_region
          // Predicated region
          $region49: #{tpu_custom_call.1} parent=47 // pred_check
            %p419 = pneg %p237
          $region50: #{tpu_custom_call.1} parent=47 // pred_check_branch
            %421 = sbr.rel (%p419) target = $region52
          $region51: #{tpu_custom_call.1} parent=47 // pred_region
            %v422 = vld [vmem:[#allocation2] sm:$0x1]
            %vm423 = vcmp.ne.f32.partialorder %v422, 0.0
            %v424 = vsel %vm423, 1, 0
            %v425 = vcvt.s32.f32 %v424
            %v426 = vsub.f32 1.0, %v425
            %v427 = vadd.f32 %v422, %v426
            %v428 = vrcp.pop %v427
            %v429 = vmul.f32 %v425, %v428
            %v430 = vld [vmem:[#allocation3] sm:$0xf]
            %v432 = vlaneseq
            %v433 = vshrl.u32 %v432, 7
            %v434 = vsub.s32 0, %v433
            %v435 = vrot.slane %v429, %v434
            %v437 = vmul.f32 %v430, %v435
            %vm438 = vcmask 60416
            %439 = vst.msk [vmem:[#allocation3] sm:$0xf] %vm438, %v437
          $region52: #{tpu_custom_call.1} parent=47 // pred_fallthru
            _
          %s440 = smul.u32 %s26, 128
          %s441 = sshra.s32 %s440, 7
          %s442 = sand.u32 %s440, 127
          %s443 = smul.addr %s441, 8
          %s444 = scalar_lea.vmem [#allocation5], %s443
          %v445 = vld [vmem:[%s444] sm:$0xf]
          %v446 = vld [vmem:[%s444 + $0x4] ss:$0 sm:$0xff]
          %v447 = vcvt.f32.s32.to.zero.pseudo %v446
          %vm448 = vcmp.eq.s32.totalorder %v447, %v235
          %v449 = vsel %vm448, 1, 0
          %v450 = vcvt.s32.f32 %v449
          %v451 = vld [vmem:[#allocation3] sm:$0xf]
          %vm452 = vcmask 64512
          %v454 = vsel %vm452, %v451, 0
          %456 = vmatprep.subr.mxu0 0.0
          %457 = vmatpush1.msra.mxu0 0.0
          %458 = vmatprep.subr.mxu0 0.0
          %459 = vmatpush1.msra.mxu0 0.0
          %460 = vmatprep.subr.mxu0 0.0
          %461 = vmatpush1.msra.mxu0 0.0
          %462 = vmatprep.subr.mxu0 0.0
          %463 = vmatpush1.msra.mxu0 0.0
          %464 = vmatprep.subr.mxu0 0.0
          %465 = vmatpush1.msra.mxu0 0.0
          %466 = vmatprep.subr.mxu0 0.0
          %467 = vmatpush1.msra.mxu0 0.0
          %468 = vmatprep.subr.mxu0 0.0
          %469 = vmatpush1.msra.mxu0 0.0
          %470 = vmatprep.subr.mxu0 0.0
          %471 = vmatpush1.msra.mxu0 0.0
          %472 = vmatprep.subr.mxu0 0.0
          %473 = vmatpush1.msra.mxu0 0.0
          %474 = vmatprep.subr.mxu0 0.0
          %475 = vmatpush1.msra.mxu0 0.0
          %476 = vmatprep.subr.mxu0 0.0
          %477 = vmatpush1.msra.mxu0 0.0
          %478 = vmatprep.subr.mxu0 0.0
          %479 = vmatpush1.msra.mxu0 0.0
          %480 = vmatprep.subr.mxu0 0.0
          %481 = vmatpush1.msra.mxu0 0.0
          %482 = vmatprep.subr.mxu0 0.0
          %483 = vmatpush1.msra.mxu0 0.0
          %484 = vmatprep.subr.mxu0 0.0
          %485 = vmatpush1.msra.mxu0 0.0
          %486 = vmatprep.subr.mxu0 0.0
          %487 = vmatpush1.msra.mxu0 %v450
          %488 = vmatprep.subr.mxu0 0.0
          %489 = vmatpush2.msra.mxu0 0.0
          %490 = vmatprep.subr.mxu0 0.0
          %491 = vmatpush2.msra.mxu0 0.0
          %492 = vmatprep.subr.mxu0 0.0
          %493 = vmatpush2.msra.mxu0 0.0
          %494 = vmatprep.subr.mxu0 0.0
          %495 = vmatpush2.msra.mxu0 0.0
          %496 = vmatprep.subr.mxu0 0.0
          %497 = vmatpush2.msra.mxu0 0.0
          %498 = vmatprep.subr.mxu0 0.0
          %499 = vmatpush2.msra.mxu0 0.0
          %500 = vmatprep.subr.mxu0 0.0
          %501 = vmatpush2.msra.mxu0 0.0
          %502 = vmatprep.subr.mxu0 0.0
          %503 = vmatpush2.msra.mxu0 0.0
          %504 = vmatprep.subr.mxu0 0.0
          %505 = vmatpush2.msra.mxu0 0.0
          %506 = vmatprep.subr.mxu0 0.0
          %507 = vmatpush2.msra.mxu0 0.0
          %508 = vmatprep.subr.mxu0 0.0
          %509 = vmatpush2.msra.mxu0 0.0
          %510 = vmatprep.subr.mxu0 0.0
          %511 = vmatpush2.msra.mxu0 0.0
          %512 = vmatprep.subr.mxu0 0.0
          %513 = vmatpush2.msra.mxu0 0.0
          %514 = vmatprep.subr.mxu0 0.0
          %515 = vmatpush2.msra.mxu0 0.0
          %516 = vmatprep.subr.mxu0 0.0
          %517 = vmatpush2.msra.mxu0 0.0
          %518 = vmatprep.subr.mxu0 0.0
          %519 = vmatpush2.msra.mxu0 0.0
          %520 = vmatprep.mubr.f32.mxu0 0.0
          %521 = vmatmul.mubr.f32.gmra.mxu0 %v454
          %v522 = vpop.f32.mrf.mxu0
          %v523 = vadd.f32 0.0, %v522
          %v524 = vpop.f32.mrf.mxu0
          %525 = vdwg.mxu0
          %v526 = vsub.f32 %v445, %v523
          %v527 = vmul.f32 %v526, %v526
          %vm528 = vcmask 1043456
          %v529 = vsel %vm528, %v527, 0.0
          %v530 = vrot.slane %v529, 4
          %v531 = vadd.f32 %v529, %v530
          %v532 = vrot.slane %v531, 2
          %v533 = vadd.f32 %v531, %v532
          %v534 = vrot.slane %v533, 1
          %v535 = vadd.f32 %v533, %v534
          %v536 = vrsqrt.pop %v535
          %v537 = vmul.f32 %v535, %v536
          %vm538 = vcmp.eq.f32.partialorder %v535, inf
          %v539 = vsel %vm538, %v535, %v537
          %vm540 = vcmp.eq.f32.partialorder %v535, 0.0
          %v541 = vand.u32 %v535, 2147483648
          %v542 = vsel %vm540, %v541, %v539
          %v543 = vsub.f32 %v542, 1.0
          %v544 = vmax.f32 %v543, 0.0
          %v545 = vmul.f32 %v544, %v544
          %v546 = vld [vmem:[#allocation4] sm:$0x1]
          %547 = vmatprep.subr.mxu0 0.0
          %548 = vmatpush1.xpose.msra.mxu0 0.0
          %549 = vmatprep.subr.mxu0 0.0
          %550 = vmatpush1.xpose.msra.mxu0 0.0
          %551 = vmatprep.subr.mxu0 0.0
          %552 = vmatpush1.xpose.msra.mxu0 0.0
          %553 = vmatprep.subr.mxu0 0.0
          %554 = vmatpush1.xpose.msra.mxu0 0.0
          %555 = vmatprep.subr.mxu0 0.0
          %556 = vmatpush1.xpose.msra.mxu0 0.0
          %557 = vmatprep.subr.mxu0 0.0
          %558 = vmatpush1.xpose.msra.mxu0 0.0
          %559 = vmatprep.subr.mxu0 0.0
          %560 = vmatpush1.xpose.msra.mxu0 0.0
          %561 = vmatprep.subr.mxu0 0.0
          %562 = vmatpush1.xpose.msra.mxu0 0.0
          %563 = vmatprep.subr.mxu0 0.0
          %564 = vmatpush1.xpose.msra.mxu0 0.0
          %565 = vmatprep.subr.mxu0 0.0
          %566 = vmatpush1.xpose.msra.mxu0 0.0
          %567 = vmatprep.subr.mxu0 0.0
          %568 = vmatpush1.xpose.msra.mxu0 0.0
          %569 = vmatprep.subr.mxu0 0.0
          %570 = vmatpush1.xpose.msra.mxu0 0.0
          %571 = vmatprep.subr.mxu0 0.0
          %572 = vmatpush1.xpose.msra.mxu0 0.0
          %573 = vmatprep.subr.mxu0 0.0
          %574 = vmatpush1.xpose.msra.mxu0 0.0
          %575 = vmatprep.subr.mxu0 0.0
          %576 = vmatpush1.xpose.msra.mxu0 0.0
          %577 = vmatprep.subr.mxu0 0.0
          %578 = vmatpush1.xpose.msra.mxu0 %v450
          %579 = vmatprep.subr.mxu0 0.0
          %580 = vmatpush2.xpose.msra.mxu0 0.0
          %581 = vmatprep.subr.mxu0 0.0
          %582 = vmatpush2.xpose.msra.mxu0 0.0
          %583 = vmatprep.subr.mxu0 0.0
          %584 = vmatpush2.xpose.msra.mxu0 0.0
          %585 = vmatprep.subr.mxu0 0.0
          %586 = vmatpush2.xpose.msra.mxu0 0.0
          %587 = vmatprep.subr.mxu0 0.0
          %588 = vmatpush2.xpose.msra.mxu0 0.0
          %589 = vmatprep.subr.mxu0 0.0
          %590 = vmatpush2.xpose.msra.mxu0 0.0
          %591 = vmatprep.subr.mxu0 0.0
          %592 = vmatpush2.xpose.msra.mxu0 0.0
          %593 = vmatprep.subr.mxu0 0.0
          %594 = vmatpush2.xpose.msra.mxu0 0.0
          %595 = vmatprep.subr.mxu0 0.0
          %596 = vmatpush2.xpose.msra.mxu0 0.0
          %597 = vmatprep.subr.mxu0 0.0
          %598 = vmatpush2.xpose.msra.mxu0 0.0
          %599 = vmatprep.subr.mxu0 0.0
          %600 = vmatpush2.xpose.msra.mxu0 0.0
          %601 = vmatprep.subr.mxu0 0.0
          %602 = vmatpush2.xpose.msra.mxu0 0.0
          %603 = vmatprep.subr.mxu0 0.0
          %604 = vmatpush2.xpose.msra.mxu0 0.0
          %605 = vmatprep.subr.mxu0 0.0
          %606 = vmatpush2.xpose.msra.mxu0 0.0
          %607 = vmatprep.subr.mxu0 0.0
          %608 = vmatpush2.xpose.msra.mxu0 0.0
          %609 = vmatprep.subr.mxu0 0.0
          %610 = vmatpush2.xpose.msra.mxu0 0.0
          %611 = vmatprep.mubr.f32.mxu0 0.0
          %612 = vmatmul.mubr.f32.gmra.mxu0 %v545
          %v613 = vpop.f32.mrf.mxu0
          %v614 = vadd.f32 0.0, %v613
          %v615 = vpop.f32.mrf.mxu0
          %616 = vdwg.mxu0
          %v617 = vadd.f32 %v546, %v614
          %vm618 = vcmask 57344
          %619 = vst.msk [vmem:[#allocation4] sm:$0x1] %vm618, %v617
          %p620 = scmp.eq.s32.totalorder %s26, 1
          // Predicated region
          $region53: #{tpu_custom_call.1} parent=47 // pred_check
            %p621 = pneg %p620
          $region54: #{tpu_custom_call.1} parent=47 // pred_check_branch
            %623 = sbr.rel (%p621) target = $region56
          $region55: #{tpu_custom_call.1} parent=47 // pred_region
            %v624 = vld [vmem:[#allocation2] sm:$0x1]
            %vm625 = vcmp.ne.f32.partialorder %v624, 0.0
            %v626 = vsel %vm625, 1, 0
            %v627 = vcvt.s32.f32 %v626
            %v628 = vsub.f32 1.0, %v627
            %v629 = vadd.f32 %v624, %v628
            %v630 = vrcp.pop %v629
            %v631 = vmul.f32 %v627, %v630
            %v632 = vsel %vm618, %v627, 0.0
            %633 = vadd.xlane.f32.xlu0 %v632
            %v634 = vpop.xlane.xlu0 %633
            %v635 = vrot.slane %v634, 4
            %v636 = vadd.f32 %v634, %v635
            %v637 = vrot.slane %v636, 2
            %v638 = vadd.f32 %v636, %v637
            %v639 = vrot.slane %v638, 1
            %v640 = vadd.f32 %v638, %v639
            %s641 = vtos %v640
            %v642 = vstv %s641
            %v643 = vsub.f32 %v642, 1.0
            %v644 = vmul.f32 %v642, %v643
            %v645 = vmul.f32 %v644, 0.5
            %v646 = vld [vmem:[#allocation4] sm:$0x1]
            %v647 = vmul.f32 %v646, %v631
            %v648 = vsel %vm618, %v647, 0.0
            %649 = vadd.xlane.f32.xlu0 %v648
            %v650 = vpop.xlane.xlu0 %649
            %v651 = vrot.slane %v650, 4
            %v652 = vadd.f32 %v650, %v651
            %v653 = vrot.slane %v652, 2
            %v654 = vadd.f32 %v652, %v653
            %v655 = vrot.slane %v654, 1
            %v656 = vadd.f32 %v654, %v655
            %s657 = vtos %v656
            %v658 = vstv %s657
            %v659 = vrcp.pop %v642
            %v660 = vmul.f32 %v658, %v659
            %v661 = vld [vmem:[#allocation3] sm:$0xf]
            %v662 = vlaneseq
            %v663 = vand.u32 %v662, 127
            %665 = vset.pattern.permute.xlu0 0
            %666 = vperm.xlu0 %665, %v661
            %v667 = vpop.permute.xlu0 %666
            %v669 = vsub.f32 %v661, %v667
            %v670 = vmul.f32 %v669, %v669
            %vm671 = vcmask 60416
            %v672 = vsel %vm671, %v670, 0.0
            %v673 = vrot.slane %v672, 4
            %v674 = vadd.f32 %v672, %v673
            %v675 = vrot.slane %v674, 2
            %v676 = vadd.f32 %v674, %v675
            %v677 = vrot.slane %v676, 1
            %v678 = vadd.f32 %v676, %v677
            %v679 = vrsqrt.pop %v678
            %v680 = vmul.f32 %v678, %v679
            %vm681 = vcmp.eq.f32.partialorder %v678, inf
            %v682 = vsel %vm681, %v678, %v680
            %vm683 = vcmp.eq.f32.partialorder %v678, 0.0
            %v684 = vand.u32 %v678, 2147483648
            %v685 = vsel %vm683, %v684, %v682
            %vm686 = vcmp.ne.s32.totalorder %v663, 0
            %v687 = vsel %vm686, 1, 0
            %v688 = vcvt.s32.f32 %v687
            %v689 = vmul.f32 %v688, %v627
            %691 = vset.pattern.permute.xlu0 0
            %692 = vperm.xlu0 %691, %v627
            %v693 = vpop.permute.xlu0 %692
            %v695 = vlaneseq
            %v696 = vshrl.u32 %v695, 7
            %v697 = vsub.s32 0, %v696
            %v698 = vrot.slane %v693, %v697
            %v699 = vmul.f32 %v689, %v698
            %v700 = vsub.f32 2.0, %v685
            %v701 = vmax.f32 %v700, 0.0
            %v702 = vmul.f32 %v701, %v701
            %v703 = vmul.f32 %v702, %v699
            %v704 = vsel %vm618, %v703, 0.0
            %705 = vadd.xlane.f32.xlu0 %v704
            %v706 = vpop.xlane.xlu0 %705
            %v707 = vrot.slane %v706, 4
            %v708 = vadd.f32 %v706, %v707
            %v709 = vrot.slane %v708, 2
            %v710 = vadd.f32 %v708, %v709
            %v711 = vrot.slane %v710, 1
            %v712 = vadd.f32 %v710, %v711
            %s713 = vtos %v712
            %v714 = vstv %s713
            %v715 = vadd.f32 %v714, 0.0
            %716 = vset.pattern.permute.xlu0 1
            %717 = vperm.xlu0 %716, %v661
            %v718 = vpop.permute.xlu0 %717
            %v720 = vsub.f32 %v661, %v718
            %v721 = vmul.f32 %v720, %v720
            %v722 = vsel %vm671, %v721, 0.0
            %v723 = vrot.slane %v722, 4
            %v724 = vadd.f32 %v722, %v723
            %v725 = vrot.slane %v724, 2
            %v726 = vadd.f32 %v724, %v725
            %v727 = vrot.slane %v726, 1
            %v728 = vadd.f32 %v726, %v727
            %v729 = vrsqrt.pop %v728
            %v730 = vmul.f32 %v728, %v729
            %vm731 = vcmp.eq.f32.partialorder %v728, inf
            %v732 = vsel %vm731, %v728, %v730
            %vm733 = vcmp.eq.f32.partialorder %v728, 0.0
            %v734 = vand.u32 %v728, 2147483648
            %v735 = vsel %vm733, %v734, %v732
            %vm736 = vcmp.ne.s32.totalorder %v663, 1
            %v737 = vsel %vm736, 1, 0
            %v738 = vcvt.s32.f32 %v737
            %v739 = vmul.f32 %v738, %v627
            %740 = vset.pattern.permute.xlu0 1
            %741 = vperm.xlu0 %740, %v627
            %v742 = vpop.permute.xlu0 %741
            %v744 = vlaneseq
            %v745 = vshrl.u32 %v744, 7
            %v746 = vsub.s32 0, %v745
            %v747 = vrot.slane %v742, %v746
            %v748 = vmul.f32 %v739, %v747
            %v749 = vsub.f32 2.0, %v735
            %v750 = vmax.f32 %v749, 0.0
            %v751 = vmul.f32 %v750, %v750
            %v752 = vmul.f32 %v751, %v748
            %v753 = vsel %vm618, %v752, 0.0
            %754 = vadd.xlane.f32.xlu0 %v753
            %v755 = vpop.xlane.xlu0 %754
            %v756 = vrot.slane %v755, 4
            %v757 = vadd.f32 %v755, %v756
            %v758 = vrot.slane %v757, 2
            %v759 = vadd.f32 %v757, %v758
            %v760 = vrot.slane %v759, 1
            %v761 = vadd.f32 %v759, %v760
            %s762 = vtos %v761
            %v763 = vstv %s762
            %v764 = vadd.f32 %v715, %v763
            %765 = vset.pattern.permute.xlu0 2
            %766 = vperm.xlu0 %765, %v661
            %v767 = vpop.permute.xlu0 %766
            %v769 = vsub.f32 %v661, %v767
            %v770 = vmul.f32 %v769, %v769
            %v771 = vsel %vm671, %v770, 0.0
            %v772 = vrot.slane %v771, 4
            %v773 = vadd.f32 %v771, %v772
            %v774 = vrot.slane %v773, 2
            %v775 = vadd.f32 %v773, %v774
            %v776 = vrot.slane %v775, 1
            %v777 = vadd.f32 %v775, %v776
            %v778 = vrsqrt.pop %v777
            %v779 = vmul.f32 %v777, %v778
            %vm780 = vcmp.eq.f32.partialorder %v777, inf
            %v781 = vsel %vm780, %v777, %v779
            %vm782 = vcmp.eq.f32.partialorder %v777, 0.0
            %v783 = vand.u32 %v777, 2147483648
            %v784 = vsel %vm782, %v783, %v781
            %vm785 = vcmp.ne.s32.totalorder %v663, 2
            %v786 = vsel %vm785, 1, 0
            %v787 = vcvt.s32.f32 %v786
            %v788 = vmul.f32 %v787, %v627
            %789 = vset.pattern.permute.xlu0 2
            %790 = vperm.xlu0 %789, %v627
            %v791 = vpop.permute.xlu0 %790
            %v793 = vlaneseq
            %v794 = vshrl.u32 %v793, 7
            %v795 = vsub.s32 0, %v794
            %v796 = vrot.slane %v791, %v795
            %v797 = vmul.f32 %v788, %v796
            %v798 = vsub.f32 2.0, %v784
            %v799 = vmax.f32 %v798, 0.0
            %v800 = vmul.f32 %v799, %v799
            %v801 = vmul.f32 %v800, %v797
            %v802 = vsel %vm618, %v801, 0.0
            %803 = vadd.xlane.f32.xlu0 %v802
            %v804 = vpop.xlane.xlu0 %803
            %v805 = vrot.slane %v804, 4
            %v806 = vadd.f32 %v804, %v805
            %v807 = vrot.slane %v806, 2
            %v808 = vadd.f32 %v806, %v807
            %v809 = vrot.slane %v808, 1
            %v810 = vadd.f32 %v808, %v809
            %s811 = vtos %v810
            %v812 = vstv %s811
            %v813 = vadd.f32 %v764, %v812
            %814 = vset.pattern.permute.xlu0 3
            %815 = vperm.xlu0 %814, %v661
            %v816 = vpop.permute.xlu0 %815
            %v818 = vsub.f32 %v661, %v816
            %v819 = vmul.f32 %v818, %v818
            %v820 = vsel %vm671, %v819, 0.0
            %v821 = vrot.slane %v820, 4
            %v822 = vadd.f32 %v820, %v821
            %v823 = vrot.slane %v822, 2
            %v824 = vadd.f32 %v822, %v823
            %v825 = vrot.slane %v824, 1
            %v826 = vadd.f32 %v824, %v825
            %v827 = vrsqrt.pop %v826
            %v828 = vmul.f32 %v826, %v827
            %vm829 = vcmp.eq.f32.partialorder %v826, inf
            %v830 = vsel %vm829, %v826, %v828
            %vm831 = vcmp.eq.f32.partialorder %v826, 0.0
            %v832 = vand.u32 %v826, 2147483648
            %v833 = vsel %vm831, %v832, %v830
            %vm834 = vcmp.ne.s32.totalorder %v663, 3
            %v835 = vsel %vm834, 1, 0
            %v836 = vcvt.s32.f32 %v835
            %v837 = vmul.f32 %v836, %v627
            %838 = vset.pattern.permute.xlu0 3
            %839 = vperm.xlu0 %838, %v627
            %v840 = vpop.permute.xlu0 %839
            %v842 = vlaneseq
            %v843 = vshrl.u32 %v842, 7
            %v844 = vsub.s32 0, %v843
            %v845 = vrot.slane %v840, %v844
            %v846 = vmul.f32 %v837, %v845
            %v847 = vsub.f32 2.0, %v833
            %v848 = vmax.f32 %v847, 0.0
            %v849 = vmul.f32 %v848, %v848
            %v850 = vmul.f32 %v849, %v846
            %v851 = vsel %vm618, %v850, 0.0
            %852 = vadd.xlane.f32.xlu0 %v851
            %v853 = vpop.xlane.xlu0 %852
            %v854 = vrot.slane %v853, 4
            %v855 = vadd.f32 %v853, %v854
            %v856 = vrot.slane %v855, 2
            %v857 = vadd.f32 %v855, %v856
            %v858 = vrot.slane %v857, 1
            %v859 = vadd.f32 %v857, %v858
            %s860 = vtos %v859
            %v861 = vstv %s860
            %v862 = vadd.f32 %v813, %v861
            %863 = vset.pattern.permute.xlu0 4
            %864 = vperm.xlu0 %863, %v661
            %v865 = vpop.permute.xlu0 %864
            %v867 = vsub.f32 %v661, %v865
            %v868 = vmul.f32 %v867, %v867
            %v869 = vsel %vm671, %v868, 0.0
            %v870 = vrot.slane %v869, 4
            %v871 = vadd.f32 %v869, %v870
            %v872 = vrot.slane %v871, 2
            %v873 = vadd.f32 %v871, %v872
            %v874 = vrot.slane %v873, 1
            %v875 = vadd.f32 %v873, %v874
            %v876 = vrsqrt.pop %v875
            %v877 = vmul.f32 %v875, %v876
            %vm878 = vcmp.eq.f32.partialorder %v875, inf
            %v879 = vsel %vm878, %v875, %v877
            %vm880 = vcmp.eq.f32.partialorder %v875, 0.0
            %v881 = vand.u32 %v875, 2147483648
            %v882 = vsel %vm880, %v881, %v879
            %vm883 = vcmp.ne.s32.totalorder %v663, 4
            %v884 = vsel %vm883, 1, 0
            %v885 = vcvt.s32.f32 %v884
            %v886 = vmul.f32 %v885, %v627
            %887 = vset.pattern.permute.xlu0 4
            %888 = vperm.xlu0 %887, %v627
            %v889 = vpop.permute.xlu0 %888
            %v891 = vlaneseq
            %v892 = vshrl.u32 %v891, 7
            %v893 = vsub.s32 0, %v892
            %v894 = vrot.slane %v889, %v893
            %v895 = vmul.f32 %v886, %v894
            %v896 = vsub.f32 2.0, %v882
            %v897 = vmax.f32 %v896, 0.0
            %v898 = vmul.f32 %v897, %v897
            %v899 = vmul.f32 %v898, %v895
            %v900 = vsel %vm618, %v899, 0.0
            %901 = vadd.xlane.f32.xlu0 %v900
            %v902 = vpop.xlane.xlu0 %901
            %v903 = vrot.slane %v902, 4
            %v904 = vadd.f32 %v902, %v903
            %v905 = vrot.slane %v904, 2
            %v906 = vadd.f32 %v904, %v905
            %v907 = vrot.slane %v906, 1
            %v908 = vadd.f32 %v906, %v907
            %s909 = vtos %v908
            %v910 = vstv %s909
            %v911 = vadd.f32 %v862, %v910
            %912 = vset.pattern.permute.xlu0 5
            %913 = vperm.xlu0 %912, %v661
            %v914 = vpop.permute.xlu0 %913
            %v916 = vsub.f32 %v661, %v914
            %v917 = vmul.f32 %v916, %v916
            %v918 = vsel %vm671, %v917, 0.0
            %v919 = vrot.slane %v918, 4
            %v920 = vadd.f32 %v918, %v919
            %v921 = vrot.slane %v920, 2
            %v922 = vadd.f32 %v920, %v921
            %v923 = vrot.slane %v922, 1
            %v924 = vadd.f32 %v922, %v923
            %v925 = vrsqrt.pop %v924
            %v926 = vmul.f32 %v924, %v925
            %vm927 = vcmp.eq.f32.partialorder %v924, inf
            %v928 = vsel %vm927, %v924, %v926
            %vm929 = vcmp.eq.f32.partialorder %v924, 0.0
            %v930 = vand.u32 %v924, 2147483648
            %v931 = vsel %vm929, %v930, %v928
            %vm932 = vcmp.ne.s32.totalorder %v663, 5
            %v933 = vsel %vm932, 1, 0
            %v934 = vcvt.s32.f32 %v933
            %v935 = vmul.f32 %v934, %v627
            %936 = vset.pattern.permute.xlu0 5
            %937 = vperm.xlu0 %936, %v627
            %v938 = vpop.permute.xlu0 %937
            %v940 = vlaneseq
            %v941 = vshrl.u32 %v940, 7
            %v942 = vsub.s32 0, %v941
            %v943 = vrot.slane %v938, %v942
            %v944 = vmul.f32 %v935, %v943
            %v945 = vsub.f32 2.0, %v931
            %v946 = vmax.f32 %v945, 0.0
            %v947 = vmul.f32 %v946, %v946
            %v948 = vmul.f32 %v947, %v944
            %v949 = vsel %vm618, %v948, 0.0
            %950 = vadd.xlane.f32.xlu0 %v949
            %v951 = vpop.xlane.xlu0 %950
            %v952 = vrot.slane %v951, 4
            %v953 = vadd.f32 %v951, %v952
            %v954 = vrot.slane %v953, 2
            %v955 = vadd.f32 %v953, %v954
            %v956 = vrot.slane %v955, 1
            %v957 = vadd.f32 %v955, %v956
            %s958 = vtos %v957
            %v959 = vstv %s958
            %v960 = vadd.f32 %v911, %v959
            %961 = vset.pattern.permute.xlu0 6
            %962 = vperm.xlu0 %961, %v661
            %v963 = vpop.permute.xlu0 %962
            %v965 = vsub.f32 %v661, %v963
            %v966 = vmul.f32 %v965, %v965
            %v967 = vsel %vm671, %v966, 0.0
            %v968 = vrot.slane %v967, 4
            %v969 = vadd.f32 %v967, %v968
            %v970 = vrot.slane %v969, 2
            %v971 = vadd.f32 %v969, %v970
            %v972 = vrot.slane %v971, 1
            %v973 = vadd.f32 %v971, %v972
            %v974 = vrsqrt.pop %v973
            %v975 = vmul.f32 %v973, %v974
            %vm976 = vcmp.eq.f32.partialorder %v973, inf
            %v977 = vsel %vm976, %v973, %v975
            %vm978 = vcmp.eq.f32.partialorder %v973, 0.0
            %v979 = vand.u32 %v973, 2147483648
            %v980 = vsel %vm978, %v979, %v977
            %vm981 = vcmp.ne.s32.totalorder %v663, 6
            %v982 = vsel %vm981, 1, 0
            %v983 = vcvt.s32.f32 %v982
            %v984 = vmul.f32 %v983, %v627
            %985 = vset.pattern.permute.xlu0 6
            %986 = vperm.xlu0 %985, %v627
            %v987 = vpop.permute.xlu0 %986
            %v989 = vlaneseq
            %v990 = vshrl.u32 %v989, 7
            %v991 = vsub.s32 0, %v990
            %v992 = vrot.slane %v987, %v991
            %v993 = vmul.f32 %v984, %v992
            %v994 = vsub.f32 2.0, %v980
            %v995 = vmax.f32 %v994, 0.0
            %v996 = vmul.f32 %v995, %v995
            %v997 = vmul.f32 %v996, %v993
            %v998 = vsel %vm618, %v997, 0.0
            %999 = vadd.xlane.f32.xlu0 %v998
            %v1000 = vpop.xlane.xlu0 %999
            %v1001 = vrot.slane %v1000, 4
            %v1002 = vadd.f32 %v1000, %v1001
            %v1003 = vrot.slane %v1002, 2
            %v1004 = vadd.f32 %v1002, %v1003
            %v1005 = vrot.slane %v1004, 1
            %v1006 = vadd.f32 %v1004, %v1005
            %s1007 = vtos %v1006
            %v1008 = vstv %s1007
            %v1009 = vadd.f32 %v960, %v1008
            %1010 = vset.pattern.permute.xlu0 7
            %1011 = vperm.xlu0 %1010, %v661
            %v1012 = vpop.permute.xlu0 %1011
            %v1014 = vsub.f32 %v661, %v1012
            %v1015 = vmul.f32 %v1014, %v1014
            %v1016 = vsel %vm671, %v1015, 0.0
            %v1017 = vrot.slane %v1016, 4
            %v1018 = vadd.f32 %v1016, %v1017
            %v1019 = vrot.slane %v1018, 2
            %v1020 = vadd.f32 %v1018, %v1019
            %v1021 = vrot.slane %v1020, 1
            %v1022 = vadd.f32 %v1020, %v1021
            %v1023 = vrsqrt.pop %v1022
            %v1024 = vmul.f32 %v1022, %v1023
            %vm1025 = vcmp.eq.f32.partialorder %v1022, inf
            %v1026 = vsel %vm1025, %v1022, %v1024
            %vm1027 = vcmp.eq.f32.partialorder %v1022, 0.0
            %v1028 = vand.u32 %v1022, 2147483648
            %v1029 = vsel %vm1027, %v1028, %v1026
            %vm1030 = vcmp.ne.s32.totalorder %v663, 7
            %v1031 = vsel %vm1030, 1, 0
            %v1032 = vcvt.s32.f32 %v1031
            %v1033 = vmul.f32 %v1032, %v627
            %1034 = vset.pattern.permute.xlu0 7
            %1035 = vperm.xlu0 %1034, %v627
            %v1036 = vpop.permute.xlu0 %1035
            %v1038 = vlaneseq
            %v1039 = vshrl.u32 %v1038, 7
            %v1040 = vsub.s32 0, %v1039
            %v1041 = vrot.slane %v1036, %v1040
            %v1042 = vmul.f32 %v1033, %v1041
            %v1043 = vsub.f32 2.0, %v1029
            %v1044 = vmax.f32 %v1043, 0.0
            %v1045 = vmul.f32 %v1044, %v1044
            %v1046 = vmul.f32 %v1045, %v1042
            %v1047 = vsel %vm618, %v1046, 0.0
            %1048 = vadd.xlane.f32.xlu0 %v1047
            %v1049 = vpop.xlane.xlu0 %1048
            %v1050 = vrot.slane %v1049, 4
            %v1051 = vadd.f32 %v1049, %v1050
            %v1052 = vrot.slane %v1051, 2
            %v1053 = vadd.f32 %v1051, %v1052
            %v1054 = vrot.slane %v1053, 1
            %v1055 = vadd.f32 %v1053, %v1054
            %s1056 = vtos %v1055
            %v1057 = vstv %s1056
            %v1058 = vadd.f32 %v1009, %v1057
            %vm1059 = vcmp.gt.f32.partialorder %v645, 0.0
            %v1060 = vmul.f32 %v1058, 0.5
            %v1061 = vmax.f32 %v645, 1.0
            %v1062 = vrcp.pop %v1061
            %v1063 = vmul.f32 %v1060, %v1062
            %v1064 = vsel %vm1059, %v1063, 0.0
            %v1065 = vmul.f32 %v661, %v661
            %v1066 = vsel %vm671, %v1065, 0.0
            %v1067 = vrot.slane %v1066, 4
            %v1068 = vadd.f32 %v1066, %v1067
            %v1069 = vrot.slane %v1068, 2
            %v1070 = vadd.f32 %v1068, %v1069
            %v1071 = vrot.slane %v1070, 1
            %v1072 = vadd.f32 %v1070, %v1071
            %v1073 = vrsqrt.pop %v1072
            %v1074 = vmul.f32 %v1072, %v1073
            %vm1075 = vcmp.eq.f32.partialorder %v1072, inf
            %v1076 = vsel %vm1075, %v1072, %v1074
            %vm1077 = vcmp.eq.f32.partialorder %v1072, 0.0
            %v1078 = vand.u32 %v1072, 2147483648
            %v1079 = vsel %vm1077, %v1078, %v1076
            %v1080 = vsub.f32 %v1079, 2.0
            %v1081 = vmax.f32 %v1080, 0.0
            %v1082 = vmul.f32 %v1081, %v1081
            %v1083 = vsel %vm618, %v1082, 0.0
            %1084 = vadd.xlane.f32.xlu0 %v1083
            %v1085 = vpop.xlane.xlu0 %1084
            %v1086 = vrot.slane %v1085, 4
            %v1087 = vadd.f32 %v1085, %v1086
            %v1088 = vrot.slane %v1087, 2
            %v1089 = vadd.f32 %v1087, %v1088
            %v1090 = vrot.slane %v1089, 1
            %v1091 = vadd.f32 %v1089, %v1090
            %s1092 = vtos %v1091
            %v1093 = vstv %s1092
            %v1094 = vmul.f32 %v1093, %v659
            %v1095 = vadd.f32 %v660, %v1064
            %v1096 = vadd.f32 %v1095, %v1094
            %vm1097 = vcmask 0
            %1098 = vst.msk [vmem:[%s233] sm:$0x1] %vm1097, %v1096
          $region56: #{tpu_custom_call.1} parent=47 // pred_fallthru
            _
        $region48: #{tpu_custom_call.1} parent=27 // pred_fallthru
          _
        %p1099 = scmp.lt.s32.totalorder %s24, 1
        %s1100 = scalar_select %p1099, %s24, 1
        %s1101 = scalar_lea.vmem %s2, %s1100
        // Predicated region
        $region57: #{tpu_custom_call.1} parent=27 // pred_check
          %p1102 = pneg %p120
        $region58: #{tpu_custom_call.1} parent=27 // pred_check_branch
          %1104 = sbr.rel (%p1102) target = $region60
        $region59: #{tpu_custom_call.1} parent=27 // pred_region
          _
        $region60: #{tpu_custom_call.1} parent=27 // pred_fallthru
          _
      $region28: #{tpu_custom_call.1} parent=5 // pred_fallthru
        _
      %p1105 = scmp.le.s32.totalorder 2, %s14
      // Predicated region
      $region61: #{tpu_custom_call.1} parent=5 // pred_check
        %p1106 = pneg %p1105
      $region62: #{tpu_custom_call.1} parent=5 // pred_check_branch
        %1108 = sbr.rel (%p1106) target = $region64
      $region63: #{tpu_custom_call.1} parent=5 // pred_region
        %s1109 = ssub.s32 %s14, 2
        // Predicated region
        $region65: #{tpu_custom_call.1} parent=63 // pred_check
          %p1110 = pneg %p126
        $region66: #{tpu_custom_call.1} parent=63 // pred_check_branch
          %1112 = sbr.rel (%p1110) target = $region68
        $region67: #{tpu_custom_call.1} parent=63 // pred_region
          %p1113 = scmp.lt.s32.totalorder %s27, 1
          %s1114 = scalar_select %p1113, %s27, 1
          %s1115 = scalar_lea.vmem %s2, %s1114
        $region68: #{tpu_custom_call.1} parent=63 // pred_fallthru
          _
      $region64: #{tpu_custom_call.1} parent=5 // pred_fallthru
        _
    $region6: #{tpu_custom_call.1} parent=1 // loop_footer
      %s18 = sadd.s32 1, %s14
    $region7: #{tpu_custom_call.1} parent=1 // loop_footer_branch
      %13 = sbr.rel target = $region3
    $region8: #{tpu_custom_call.1} parent=1 // loop_exit
      _
    %1116 = vsyncpa [#allocation7], 1
    %s1117 = scalar_lea.sflag [#allocation7], 1
    %1118 = vsyncpa %s1117, 1
    %1119 = vsyncpa [#allocation9], 1
    %s1120 = scalar_lea.sflag [#allocation9], 1
    %1121 = vsyncpa %s1120, 1

</llo_original>
